<compile_context>
chip_gen: v5e
topology: v5e:2x2
jax: 0.10.0
libtpu: 0.0.40
codegen_flags: <defaults>
</compile_context>

<pallas_src>
import math
import functools

import jax
import jax.numpy as jnp
from jax import lax
from jax.experimental import pallas as pl
from jax.experimental.pallas import tpu as pltpu


_VMEM_LIMIT = 32 * 1024 * 1024  # safe on v5e/v6e/v7x; tiles below stay well under this


def _pick_tile(dim, target, align):
    """Largest `align`-multiple divisor of `dim` that is <= target (or the full dim)."""
    if dim <= target:
        return dim
    t = (target // align) * align
    while t >= align:
        if dim % t == 0:
            return t
        t -= align
    return dim  # full dim is always a legal block


# ---------------------------------------------------------------------------
# Kernel 1: fused Q/K/V projection.
#   q = xq @ Wq + bq ; k = xk @ Wk + bk ; v = xv @ Wv + bv   (one launch, tiled)
# ---------------------------------------------------------------------------
def _qkv_proj_kernel(xq_ref, xk_ref, xv_ref,
                     wq_ref, wk_ref, wv_ref,
                     bq_ref, bk_ref, bv_ref,
                     q_ref, k_ref, v_ref,
                     acc_ref):
    kk = pl.program_id(2)

    @pl.when(kk == 0)
    def _():
        acc_ref[...] = jnp.zeros_like(acc_ref)

    acc_ref[0] += jnp.dot(xq_ref[...], wq_ref[...], preferred_element_type=jnp.float32)
    acc_ref[1] += jnp.dot(xk_ref[...], wk_ref[...], preferred_element_type=jnp.float32)
    acc_ref[2] += jnp.dot(xv_ref[...], wv_ref[...], preferred_element_type=jnp.float32)

    @pl.when(kk == pl.num_programs(2) - 1)
    def _():
        q_ref[...] = (acc_ref[0] + bq_ref[...]).astype(q_ref.dtype)
        k_ref[...] = (acc_ref[1] + bk_ref[...]).astype(k_ref.dtype)
        v_ref[...] = (acc_ref[2] + bv_ref[...]).astype(v_ref.dtype)


def qkv_projection(xq, xk, xv, wq, wk, wv, bq, bk, bv,
                   *, tm=256, tn=256, tk=256):
    """xq/xk/xv: [M, Din]; w*: [Din, Dout]; b*: [1, Dout] -> three [M, Dout] arrays."""
    M, K = xq.shape
    N = wq.shape[1]
    tm = _pick_tile(M, tm, 8)
    tn = _pick_tile(N, tn, 128)
    tk = _pick_tile(K, tk, 128)
    grid = (M // tm, N // tn, K // tk)

    x_spec = pl.BlockSpec((tm, tk), lambda i, j, k: (i, k))
    w_spec = pl.BlockSpec((tk, tn), lambda i, j, k: (k, j))
    b_spec = pl.BlockSpec((1, tn), lambda i, j, k: (0, j))
    o_spec = pl.BlockSpec((tm, tn), lambda i, j, k: (i, j))

    out_sds = jax.ShapeDtypeStruct((M, N), xq.dtype)
    return pl.pallas_call(
        _qkv_proj_kernel,
        out_shape=(out_sds, out_sds, out_sds),
        grid_spec=pltpu.PrefetchScalarGridSpec(
            num_scalar_prefetch=0,
            grid=grid,
            in_specs=[x_spec, x_spec, x_spec,
                      w_spec, w_spec, w_spec,
                      b_spec, b_spec, b_spec],
            out_specs=[o_spec, o_spec, o_spec],
            scratch_shapes=[pltpu.VMEM((3, tm, tn), jnp.float32)],
        ),
        compiler_params=pltpu.CompilerParams(
            dimension_semantics=("parallel", "parallel", "arbitrary"),
            vmem_limit_bytes=_VMEM_LIMIT,
        ),
    )(xq, xk, xv, wq, wk, wv, bq, bk, bv)


# ---------------------------------------------------------------------------
# Kernel 2: tiled linear  y = x @ W + b   (output projection)
# ---------------------------------------------------------------------------
def _linear_kernel(x_ref, w_ref, b_ref, o_ref, acc_ref):
    kk = pl.program_id(2)

    @pl.when(kk == 0)
    def _():
        acc_ref[...] = jnp.zeros_like(acc_ref)

    acc_ref[...] += jnp.dot(x_ref[...], w_ref[...], preferred_element_type=jnp.float32)

    @pl.when(kk == pl.num_programs(2) - 1)
    def _():
        o_ref[...] = (acc_ref[...] + b_ref[...]).astype(o_ref.dtype)


def linear_tiled(x, w, b, *, tm=256, tn=256, tk=256):
    """x: [M, Din], w: [Din, Dout], b: [1, Dout] -> [M, Dout]"""
    M, K = x.shape
    N = w.shape[1]
    tm = _pick_tile(M, tm, 8)
    tn = _pick_tile(N, tn, 128)
    tk = _pick_tile(K, tk, 128)
    grid = (M // tm, N // tn, K // tk)

    return pl.pallas_call(
        _linear_kernel,
        out_shape=jax.ShapeDtypeStruct((M, N), x.dtype),
        grid_spec=pltpu.PrefetchScalarGridSpec(
            num_scalar_prefetch=0,
            grid=grid,
            in_specs=[
                pl.BlockSpec((tm, tk), lambda i, j, k: (i, k)),
                pl.BlockSpec((tk, tn), lambda i, j, k: (k, j)),
                pl.BlockSpec((1, tn), lambda i, j, k: (0, j)),
            ],
            out_specs=pl.BlockSpec((tm, tn), lambda i, j, k: (i, j)),
            scratch_shapes=[pltpu.VMEM((tm, tn), jnp.float32)],
        ),
        compiler_params=pltpu.CompilerParams(
            dimension_semantics=("parallel", "parallel", "arbitrary"),
            vmem_limit_bytes=_VMEM_LIMIT,
        ),
    )(x, w, b)


# ---------------------------------------------------------------------------
# Kernel 3: multi-head scaled-dot-product attention.
# One batch element per grid step; all heads processed in-kernel so the context
# is written lane-dense in [B, S, D] layout (no wrapper-side head transposes).
# ---------------------------------------------------------------------------
def _mhsa_kernel(q_ref, k_ref, v_ref, o_ref, p_ref, *, head_num, d_k, scale):
    q_all = q_ref[0]                                   # (S, D)
    k_all = k_ref[0]                                   # (S, D)
    v_all = v_ref[0]                                   # (S, D)

    ctx_parts = []
    for h in range(head_num):                          # static unroll over heads
        lo = h * d_k
        q = q_all[:, lo:lo + d_k] * scale              # fold 1/sqrt(d_k) into q
        k = k_all[:, lo:lo + d_k]
        v = v_all[:, lo:lo + d_k]

        # q @ k^T without materializing a transpose: contract last dims directly.
        scores = lax.dot_general(
            q, k, (((1,), (1,)), ((), ())),
            preferred_element_type=jnp.float32)        # (S, S)

        m = jnp.max(scores, axis=-1, keepdims=True)
        e = jnp.exp(scores - m)
        denom = jnp.sum(e, axis=-1, keepdims=True)
        p = e * pl.reciprocal(denom, approx=True)      # softmax (EUP reciprocal)

        ctx_parts.append(
            jnp.dot(p.astype(v.dtype), v, preferred_element_type=jnp.float32))  # (S, d_k)
        p_ref[0, h] = p.astype(p_ref.dtype)

    # Lane-dense write-back in [S, D] layout (heads re-interleaved along lanes).
    o_ref[0] = jnp.concatenate(ctx_parts, axis=-1).astype(o_ref.dtype)


def mhsa(q, k, v, *, head_num):
    """q,k,v: [B, S, D] -> (ctx [B, S, D], attn [B, H, S, S])"""
    B, S, D = q.shape
    d_k = D // head_num
    scale = 1.0 / math.sqrt(d_k)
    kern = functools.partial(_mhsa_kernel, head_num=head_num, d_k=d_k, scale=scale)

    return pl.pallas_call(
        kern,
        out_shape=(
            jax.ShapeDtypeStruct((B, S, D), q.dtype),
            jax.ShapeDtypeStruct((B, head_num, S, S), q.dtype),
        ),
        grid_spec=pltpu.PrefetchScalarGridSpec(
            num_scalar_prefetch=0,
            grid=(B,),
            in_specs=[
                pl.BlockSpec((1, S, D), lambda b: (b, 0, 0)),
                pl.BlockSpec((1, S, D), lambda b: (b, 0, 0)),
                pl.BlockSpec((1, S, D), lambda b: (b, 0, 0)),
            ],
            out_specs=[
                pl.BlockSpec((1, S, D), lambda b: (b, 0, 0)),
                pl.BlockSpec((1, head_num, S, S), lambda b: (b, 0, 0, 0)),
            ],
        ),
        compiler_params=pltpu.CompilerParams(
            dimension_semantics=("parallel",),
            vmem_limit_bytes=_VMEM_LIMIT,
        ),
    )(q, k, v)


# ---------------------------------------------------------------------------
# Parameter handling
# ---------------------------------------------------------------------------
def init_params(key, dim_model):
    """PyTorch-style Linear parameters: weight [out, in], bias [out]."""
    ks = jax.random.split(key, 8)
    bound = 1.0 / math.sqrt(dim_model)

    def u(k, shape):
        return jax.random.uniform(k, shape, jnp.float32, -bound, bound)

    return {
        "wq": u(ks[0], (dim_model, dim_model)), "bq": u(ks[1], (dim_model,)),
        "wk": u(ks[2], (dim_model, dim_model)), "bk": u(ks[3], (dim_model,)),
        "wv": u(ks[4], (dim_model, dim_model)), "bv": u(ks[5], (dim_model,)),
        "wo": u(ks[6], (dim_model, dim_model)), "bo": u(ks[7], (dim_model,)),
    }


def prepare_params(params):
    """One-time layout prep: [out,in] -> [in,out] weights, (1,D) biases.

    Done once at init so the forward pass never re-transposes weights in HBM.
    """
    D = params["wq"].shape[0]
    return {
        "wq": params["wq"].T, "wk": params["wk"].T,
        "wv": params["wv"].T, "wo": params["wo"].T,
        "bq": params["bq"].reshape(1, D), "bk": params["bk"].reshape(1, D),
        "bv": params["bv"].reshape(1, D), "bo": params["bo"].reshape(1, D),
    }


# ---------------------------------------------------------------------------
# SelfAttention forward (glue is free reshapes only; all matmuls/softmax in Pallas)
# ---------------------------------------------------------------------------
def self_attention_forward(prepared, query, key, value, *, head_num):
    B, S, D = query.shape
    assert D % head_num == 0

    # Fused Q/K/V projection: one launch, three tiled matmuls sharing the pipeline.
    q2d, k2d, v2d = qkv_projection(
        query.reshape(B * S, D), key.reshape(B * S, D), value.reshape(B * S, D),
        prepared["wq"], prepared["wk"], prepared["wv"],
        prepared["bq"], prepared["bk"], prepared["bv"])

    # Multi-head attention directly on [B, S, D] activations (heads split in-kernel).
    ctx, attn = mhsa(q2d.reshape(B, S, D), k2d.reshape(B, S, D), v2d.reshape(B, S, D),
                     head_num=head_num)

    # Output projection (tiled matmul).
    out2d = linear_tiled(ctx.reshape(B * S, D), prepared["wo"], prepared["bo"])
    return out2d.reshape(B, S, D), attn


# ---------------------------------------------------------------------------
# Pure-JAX reference (PyTorch-layout params) for the correctness check
# ---------------------------------------------------------------------------
def reference_forward(params, query, key, value, *, head_num):
    B, S, D = query.shape
    d_k = D // head_num

    def lin(x, w, b):
        return x @ w.T + b

    def to_heads(t):
        return t.reshape(B, S, head_num, d_k).transpose(0, 2, 1, 3)

    qh = to_heads(lin(query, params["wq"], params["bq"]))
    kh = to_heads(lin(key, params["wk"], params["bk"]))
    vh = to_heads(lin(value, params["wv"], params["bv"]))

    scores = jnp.einsum("bhqd,bhkd->bhqk", qh, kh) / math.sqrt(d_k)
    attn = jax.nn.softmax(scores, axis=-1)
    ctx = jnp.einsum("bhqk,bhkd->bhqd", attn, vh)
    ctx = ctx.transpose(0, 2, 1, 3).reshape(B, S, D)
    return lin(ctx, params["wo"], params["bo"]), attn


if __name__ == "__main__":
    B, S, D, H = 2, 8, 32, 4   # batch, seq, dim_model, heads (d_k = 8)

    root = jax.random.PRNGKey(0)
    kp, kq, kk, kv = jax.random.split(root, 4)

    params = init_params(kp, D)
    prepared = prepare_params(params)          # one-time weight layout prep

    query = jax.random.normal(kq, (B, S, D), jnp.float32)
    key_in = jax.random.normal(kk, (B, S, D), jnp.float32)
    value = jax.random.normal(kv, (B, S, D), jnp.float32)

    fwd = jax.jit(functools.partial(self_attention_forward, head_num=H))
    feature, attn = fwd(prepared, query, key_in, value)
    feature = jax.block_until_ready(feature)
    attn = jax.block_until_ready(attn)

    ref_feat, ref_attn = reference_forward(params, query, key_in, value, head_num=H)
    assert feature.shape == (B, S, D) and attn.shape == (B, H, S, S)
    # Tolerances account for pl.reciprocal(approx=True) in the softmax denominator.
    assert jnp.allclose(feature, ref_feat, atol=5e-3, rtol=5e-3), "feature mismatch"
    assert jnp.allclose(attn, ref_attn, atol=2e-3, rtol=2e-3), "attn mismatch"

    print("KERNEL_OK")
</pallas_src>

<mosaic_0001>
module attributes {stable_mosaic.version = 11 : i64} {
  func.func @_linear_kernel(%arg0: i32, %arg1: i32, %arg2: i32, %arg3: memref<16x32xf32, #tpu.memory_space<vmem>>, %arg4: memref<32x32xf32, #tpu.memory_space<vmem>>, %arg5: memref<1x32xf32, #tpu.memory_space<vmem>>, %arg6: memref<16x32xf32, #tpu.memory_space<vmem>>, %arg7: memref<16x32xf32, #tpu.memory_space<vmem>>) attributes {dimension_semantics = [#tpu.dimension_semantics<parallel>, #tpu.dimension_semantics<parallel>, #tpu.dimension_semantics<arbitrary>], iteration_bounds = array<i64: 1, 1, 1>, scalar_prefetch = 0 : i64, scratch_operands = 1 : i64, tpu.core_type = #tpu.core_type<tc>, window_params = [{transform_indices = @transform_0, window_bounds = array<i64: 16, 32>}, {transform_indices = @transform_1, window_bounds = array<i64: 32, 32>}, {transform_indices = @transform_2, window_bounds = array<i64: 1, 32>}, {transform_indices = @transform_3, window_bounds = array<i64: 16, 32>}]} {
    %c0_i32 = arith.constant 0 : i32
    %0 = arith.cmpi eq, %arg2, %c0_i32 : i32
    %1 = arith.extui %0 : i1 to i32
    %c0_i32_0 = arith.constant 0 : i32
    %2 = arith.cmpi ne, %1, %c0_i32_0 : i32
    scf.if %2 {
      %cst_10 = arith.constant 0.000000e+00 : f32
      %12 = vector.broadcast %cst_10 : f32 to vector<16x32xf32>
      %c0_11 = arith.constant 0 : index
      %c0_12 = arith.constant 0 : index
      %13 = vector.load %arg7[%c0_11, %c0_12] : memref<16x32xf32, #tpu.memory_space<vmem>>, vector<16x32xf32>
      tpu.vector_store %arg7[%c0_11, %c0_12], %12 {strides = array<i32>} : memref<16x32xf32, #tpu.memory_space<vmem>>, vector<16x32xf32>,
    } else {
    }
    %c0 = arith.constant 0 : index
    %c0_1 = arith.constant 0 : index
    %3 = vector.load %arg7[%c0, %c0_1] : memref<16x32xf32, #tpu.memory_space<vmem>>, vector<16x32xf32>
    %c0_2 = arith.constant 0 : index
    %c0_3 = arith.constant 0 : index
    %4 = vector.load %arg3[%c0_2, %c0_3] : memref<16x32xf32, #tpu.memory_space<vmem>>, vector<16x32xf32>
    %c0_4 = arith.constant 0 : index
    %c0_5 = arith.constant 0 : index
    %5 = vector.load %arg4[%c0_4, %c0_5] : memref<32x32xf32, #tpu.memory_space<vmem>>, vector<32x32xf32>
    %cst = arith.constant dense<0.000000e+00> : vector<16x32xf32>
    %6 = tpu.matmul %4, %5, %cst {dimension_numbers = #tpu.dot_dimension_numbers<[1], [0], [0], [1], [0, 0, 1, 1], [], []>} : vector<16x32xf32>, vector<32x32xf32>, vector<16x32xf32> -> vector<16x32xf32>
    %7 = arith.addf %3, %6 : vector<16x32xf32>
    %c0_6 = arith.constant 0 : index
    %c0_7 = arith.constant 0 : index
    %8 = vector.load %arg7[%c0_6, %c0_7] : memref<16x32xf32, #tpu.memory_space<vmem>>, vector<16x32xf32>
    tpu.vector_store %arg7[%c0_6, %c0_7], %7 {strides = array<i32>} : memref<16x32xf32, #tpu.memory_space<vmem>>, vector<16x32xf32>,
    %c0_i32_8 = arith.constant 0 : i32
    %9 = arith.cmpi eq, %arg2, %c0_i32_8 : i32
    %10 = arith.extui %9 : i1 to i32
    %c0_i32_9 = arith.constant 0 : i32
    %11 = arith.cmpi ne, %10, %c0_i32_9 : i32
    scf.if %11 {
      %c0_10 = arith.constant 0 : index
      %c0_11 = arith.constant 0 : index
      %12 = vector.load %arg7[%c0_10, %c0_11] : memref<16x32xf32, #tpu.memory_space<vmem>>, vector<16x32xf32>
      %c0_12 = arith.constant 0 : index
      %c0_13 = arith.constant 0 : index
      %13 = vector.load %arg5[%c0_12, %c0_13] : memref<1x32xf32, #tpu.memory_space<vmem>>, vector<1x32xf32>
      %14 = vector.broadcast %13 : vector<1x32xf32> to vector<16x32xf32>
      %15 = arith.addf %12, %14 : vector<16x32xf32>
      %c0_14 = arith.constant 0 : index
      %c0_15 = arith.constant 0 : index
      %16 = vector.load %arg6[%c0_14, %c0_15] : memref<16x32xf32, #tpu.memory_space<vmem>>, vector<16x32xf32>
      tpu.vector_store %arg6[%c0_14, %c0_15], %15 {strides = array<i32>} : memref<16x32xf32, #tpu.memory_space<vmem>>, vector<16x32xf32>,
    } else {
    }
    return
  }
  func.func @transform_0(%arg0: i32, %arg1: i32, %arg2: i32) -> (i32, i32) {
    %c0_i32 = arith.constant 0 : i32
    return %arg0, %arg2 : i32, i32
  }
  func.func @transform_1(%arg0: i32, %arg1: i32, %arg2: i32) -> (i32, i32) {
    %c0_i32 = arith.constant 0 : i32
    return %arg2, %arg1 : i32, i32
  }
  func.func @transform_2(%arg0: i32, %arg1: i32, %arg2: i32) -> (i32, i32) {
    %c0_i32 = arith.constant 0 : i32
    %c0_i32_0 = arith.constant 0 : i32
    return %c0_i32, %arg1 : i32, i32
  }
  func.func @transform_3(%arg0: i32, %arg1: i32, %arg2: i32) -> (i32, i32) {
    %c0_i32 = arith.constant 0 : i32
    return %arg0, %arg1 : i32, i32
  }
}

module attributes {stable_mosaic.version = 11 : i64} {
  func.func @_mhsa_kernel(%arg0: i32, %arg1: memref<1x8x32xf32, #tpu.memory_space<vmem>>, %arg2: memref<1x8x32xf32, #tpu.memory_space<vmem>>, %arg3: memref<1x8x32xf32, #tpu.memory_space<vmem>>, %arg4: memref<1x8x32xf32, #tpu.memory_space<vmem>>, %arg5: memref<1x4x8x8xf32, #tpu.memory_space<vmem>>) attributes {dimension_semantics = [#tpu.dimension_semantics<parallel>], iteration_bounds = array<i64: 2>, scalar_prefetch = 0 : i64, scratch_operands = 0 : i64, tpu.core_type = #tpu.core_type<tc>, window_params = [{transform_indices = @transform_0, window_bounds = array<i64: 1, 8, 32>}, {transform_indices = @transform_1, window_bounds = array<i64: 1, 8, 32>}, {transform_indices = @transform_2, window_bounds = array<i64: 1, 8, 32>}, {transform_indices = @transform_3, window_bounds = array<i64: 1, 8, 32>}, {transform_indices = @transform_4, window_bounds = array<i64: 1, 4, 8, 8>}]} {
    %c0 = arith.constant 0 : index
    %c0_0 = arith.constant 0 : index
    %c0_1 = arith.constant 0 : index
    %0 = vector.load %arg1[%c0, %c0_0, %c0_1] : memref<1x8x32xf32, #tpu.memory_space<vmem>>, vector<1x8x32xf32>
    %1 = vector.shape_cast %0 : vector<1x8x32xf32> to vector<8x32xf32>
    %c0_2 = arith.constant 0 : index
    %c0_3 = arith.constant 0 : index
    %c0_4 = arith.constant 0 : index
    %2 = vector.load %arg2[%c0_2, %c0_3, %c0_4] : memref<1x8x32xf32, #tpu.memory_space<vmem>>, vector<1x8x32xf32>
    %3 = vector.shape_cast %2 : vector<1x8x32xf32> to vector<8x32xf32>
    %c0_5 = arith.constant 0 : index
    %c0_6 = arith.constant 0 : index
    %c0_7 = arith.constant 0 : index
    %4 = vector.load %arg3[%c0_5, %c0_6, %c0_7] : memref<1x8x32xf32, #tpu.memory_space<vmem>>, vector<1x8x32xf32>
    %5 = vector.shape_cast %4 : vector<1x8x32xf32> to vector<8x32xf32>
    %6 = vector.extract_strided_slice %1 {offsets = [0, 0], sizes = [8, 8], strides = [1, 1]} : vector<8x32xf32> to vector<8x8xf32>
    %cst = arith.constant 0.353553385 : f32
    %7 = vector.broadcast %cst : f32 to vector<8x8xf32>
    %8 = arith.mulf %6, %7 : vector<8x8xf32>
    %9 = vector.extract_strided_slice %3 {offsets = [0, 0], sizes = [8, 8], strides = [1, 1]} : vector<8x32xf32> to vector<8x8xf32>
    %10 = vector.extract_strided_slice %5 {offsets = [0, 0], sizes = [8, 8], strides = [1, 1]} : vector<8x32xf32> to vector<8x8xf32>
    %cst_8 = arith.constant dense<0.000000e+00> : vector<8x8xf32>
    %11 = tpu.matmul %8, %9, %cst_8 {dimension_numbers = #tpu.dot_dimension_numbers<[1], [1], [0], [0], [0, 0, 1, 0], [], []>} : vector<8x8xf32>, vector<8x8xf32>, vector<8x8xf32> -> vector<8x8xf32>
    %cst_9 = arith.constant dense<0xFF800000> : vector<8xf32>
    %12 = vector.multi_reduction <maximumf>, %11, %cst_9 [1] : vector<8x8xf32> to vector<8xf32>
    %13 = vector.shape_cast %12 : vector<8xf32> to vector<8x1xf32>
    %14 = vector.broadcast %13 : vector<8x1xf32> to vector<8x8xf32>
    %15 = arith.subf %11, %14 : vector<8x8xf32>
    %16 = math.exp %15 : vector<8x8xf32>
    %cst_10 = arith.constant dense<0.000000e+00> : vector<8xf32>
    %17 = vector.multi_reduction <add>, %16, %cst_10 [1] : vector<8x8xf32> to vector<8xf32>
    %18 = vector.shape_cast %17 : vector<8xf32> to vector<8x1xf32>
    %19 = tpu.reciprocal %18 {approx = true} : vector<8x1xf32> -> vector<8x1xf32>
    %20 = vector.broadcast %19 : vector<8x1xf32> to vector<8x8xf32>
    %21 = arith.mulf %16, %20 : vector<8x8xf32>
    %cst_11 = arith.constant dense<0.000000e+00> : vector<8x8xf32>
    %22 = tpu.matmul %21, %10, %cst_11 {dimension_numbers = #tpu.dot_dimension_numbers<[1], [0], [0], [1], [0, 0, 1, 1], [], []>} : vector<8x8xf32>, vector<8x8xf32>, vector<8x8xf32> -> vector<8x8xf32>
    %c0_12 = arith.constant 0 : index
    %c0_13 = arith.constant 0 : index
    %c0_14 = arith.constant 0 : index
    %c0_15 = arith.constant 0 : index
    %23 = vector.load %arg5[%c0_12, %c0_13, %c0_14, %c0_15] : memref<1x4x8x8xf32, #tpu.memory_space<vmem>>, vector<1x1x8x8xf32>
    %24 = vector.shape_cast %23 : vector<1x1x8x8xf32> to vector<8x8xf32>
    %25 = vector.shape_cast %21 : vector<8x8xf32> to vector<1x1x8x8xf32>
    tpu.vector_store %arg5[%c0_12, %c0_13, %c0_14, %c0_15], %25 {strides = array<i32>} : memref<1x4x8x8xf32, #tpu.memory_space<vmem>>, vector<1x1x8x8xf32>,
    %26 = vector.extract_strided_slice %1 {offsets = [0, 8], sizes = [8, 8], strides = [1, 1]} : vector<8x32xf32> to vector<8x8xf32>
    %cst_16 = arith.constant 0.353553385 : f32
    %27 = vector.broadcast %cst_16 : f32 to vector<8x8xf32>
    %28 = arith.mulf %26, %27 : vector<8x8xf32>
    %29 = vector.extract_strided_slice %3 {offsets = [0, 8], sizes = [8, 8], strides = [1, 1]} : vector<8x32xf32> to vector<8x8xf32>
    %30 = vector.extract_strided_slice %5 {offsets = [0, 8], sizes = [8, 8], strides = [1, 1]} : vector<8x32xf32> to vector<8x8xf32>
    %cst_17 = arith.constant dense<0.000000e+00> : vector<8x8xf32>
    %31 = tpu.matmul %28, %29, %cst_17 {dimension_numbers = #tpu.dot_dimension_numbers<[1], [1], [0], [0], [0, 0, 1, 0], [], []>} : vector<8x8xf32>, vector<8x8xf32>, vector<8x8xf32> -> vector<8x8xf32>
    %cst_18 = arith.constant dense<0xFF800000> : vector<8xf32>
    %32 = vector.multi_reduction <maximumf>, %31, %cst_18 [1] : vector<8x8xf32> to vector<8xf32>
    %33 = vector.shape_cast %32 : vector<8xf32> to vector<8x1xf32>
    %34 = vector.broadcast %33 : vector<8x1xf32> to vector<8x8xf32>
    %35 = arith.subf %31, %34 : vector<8x8xf32>
    %36 = math.exp %35 : vector<8x8xf32>
    %cst_19 = arith.constant dense<0.000000e+00> : vector<8xf32>
    %37 = vector.multi_reduction <add>, %36, %cst_19 [1] : vector<8x8xf32> to vector<8xf32>
    %38 = vector.shape_cast %37 : vector<8xf32> to vector<8x1xf32>
    %39 = tpu.reciprocal %38 {approx = true} : vector<8x1xf32> -> vector<8x1xf32>
    %40 = vector.broadcast %39 : vector<8x1xf32> to vector<8x8xf32>
    %41 = arith.mulf %36, %40 : vector<8x8xf32>
    %cst_20 = arith.constant dense<0.000000e+00> : vector<8x8xf32>
    %42 = tpu.matmul %41, %30, %cst_20 {dimension_numbers = #tpu.dot_dimension_numbers<[1], [0], [0], [1], [0, 0, 1, 1], [], []>} : vector<8x8xf32>, vector<8x8xf32>, vector<8x8xf32> -> vector<8x8xf32>
    %c0_21 = arith.constant 0 : index
    %c1 = arith.constant 1 : index
    %c0_22 = arith.constant 0 : index
    %c0_23 = arith.constant 0 : index
    %43 = vector.load %arg5[%c0_21, %c1, %c0_22, %c0_23] : memref<1x4x8x8xf32, #tpu.memory_space<vmem>>, vector<1x1x8x8xf32>
    %44 = vector.shape_cast %43 : vector<1x1x8x8xf32> to vector<8x8xf32>
    %45 = vector.shape_cast %41 : vector<8x8xf32> to vector<1x1x8x8xf32>
    tpu.vector_store %arg5[%c0_21, %c1, %c0_22, %c0_23], %45 {strides = array<i32>} : memref<1x4x8x8xf32, #tpu.memory_space<vmem>>, vector<1x1x8x8xf32>,
    %46 = vector.extract_strided_slice %1 {offsets = [0, 16], sizes = [8, 8], strides = [1, 1]} : vector<8x32xf32> to vector<8x8xf32>
    %cst_24 = arith.constant 0.353553385 : f32
    %47 = vector.broadcast %cst_24 : f32 to vector<8x8xf32>
    %48 = arith.mulf %46, %47 : vector<8x8xf32>
    %49 = vector.extract_strided_slice %3 {offsets = [0, 16], sizes = [8, 8], strides = [1, 1]} : vector<8x32xf32> to vector<8x8xf32>
    %50 = vector.extract_strided_slice %5 {offsets = [0, 16], sizes = [8, 8], strides = [1, 1]} : vector<8x32xf32> to vector<8x8xf32>
    %cst_25 = arith.constant dense<0.000000e+00> : vector<8x8xf32>
    %51 = tpu.matmul %48, %49, %cst_25 {dimension_numbers = #tpu.dot_dimension_numbers<[1], [1], [0], [0], [0, 0, 1, 0], [], []>} : vector<8x8xf32>, vector<8x8xf32>, vector<8x8xf32> -> vector<8x8xf32>
    %cst_26 = arith.constant dense<0xFF800000> : vector<8xf32>
    %52 = vector.multi_reduction <maximumf>, %51, %cst_26 [1] : vector<8x8xf32> to vector<8xf32>
    %53 = vector.shape_cast %52 : vector<8xf32> to vector<8x1xf32>
    %54 = vector.broadcast %53 : vector<8x1xf32> to vector<8x8xf32>
    %55 = arith.subf %51, %54 : vector<8x8xf32>
    %56 = math.exp %55 : vector<8x8xf32>
    %cst_27 = arith.constant dense<0.000000e+00> : vector<8xf32>
    %57 = vector.multi_reduction <add>, %56, %cst_27 [1] : vector<8x8xf32> to vector<8xf32>
    %58 = vector.shape_cast %57 : vector<8xf32> to vector<8x1xf32>
    %59 = tpu.reciprocal %58 {approx = true} : vector<8x1xf32> -> vector<8x1xf32>
    %60 = vector.broadcast %59 : vector<8x1xf32> to vector<8x8xf32>
    %61 = arith.mulf %56, %60 : vector<8x8xf32>
    %cst_28 = arith.constant dense<0.000000e+00> : vector<8x8xf32>
    %62 = tpu.matmul %61, %50, %cst_28 {dimension_numbers = #tpu.dot_dimension_numbers<[1], [0], [0], [1], [0, 0, 1, 1], [], []>} : vector<8x8xf32>, vector<8x8xf32>, vector<8x8xf32> -> vector<8x8xf32>
    %c0_29 = arith.constant 0 : index
    %c2 = arith.constant 2 : index
    %c0_30 = arith.constant 0 : index
    %c0_31 = arith.constant 0 : index
    %63 = vector.load %arg5[%c0_29, %c2, %c0_30, %c0_31] : memref<1x4x8x8xf32, #tpu.memory_space<vmem>>, vector<1x1x8x8xf32>
    %64 = vector.shape_cast %63 : vector<1x1x8x8xf32> to vector<8x8xf32>
    %65 = vector.shape_cast %61 : vector<8x8xf32> to vector<1x1x8x8xf32>
    tpu.vector_store %arg5[%c0_29, %c2, %c0_30, %c0_31], %65 {strides = array<i32>} : memref<1x4x8x8xf32, #tpu.memory_space<vmem>>, vector<1x1x8x8xf32>,
    %66 = vector.extract_strided_slice %1 {offsets = [0, 24], sizes = [8, 8], strides = [1, 1]} : vector<8x32xf32> to vector<8x8xf32>
    %cst_32 = arith.constant 0.353553385 : f32
    %67 = vector.broadcast %cst_32 : f32 to vector<8x8xf32>
    %68 = arith.mulf %66, %67 : vector<8x8xf32>
    %69 = vector.extract_strided_slice %3 {offsets = [0, 24], sizes = [8, 8], strides = [1, 1]} : vector<8x32xf32> to vector<8x8xf32>
    %70 = vector.extract_strided_slice %5 {offsets = [0, 24], sizes = [8, 8], strides = [1, 1]} : vector<8x32xf32> to vector<8x8xf32>
    %cst_33 = arith.constant dense<0.000000e+00> : vector<8x8xf32>
    %71 = tpu.matmul %68, %69, %cst_33 {dimension_numbers = #tpu.dot_dimension_numbers<[1], [1], [0], [0], [0, 0, 1, 0], [], []>} : vector<8x8xf32>, vector<8x8xf32>, vector<8x8xf32> -> vector<8x8xf32>
    %cst_34 = arith.constant dense<0xFF800000> : vector<8xf32>
    %72 = vector.multi_reduction <maximumf>, %71, %cst_34 [1] : vector<8x8xf32> to vector<8xf32>
    %73 = vector.shape_cast %72 : vector<8xf32> to vector<8x1xf32>
    %74 = vector.broadcast %73 : vector<8x1xf32> to vector<8x8xf32>
    %75 = arith.subf %71, %74 : vector<8x8xf32>
    %76 = math.exp %75 : vector<8x8xf32>
    %cst_35 = arith.constant dense<0.000000e+00> : vector<8xf32>
    %77 = vector.multi_reduction <add>, %76, %cst_35 [1] : vector<8x8xf32> to vector<8xf32>
    %78 = vector.shape_cast %77 : vector<8xf32> to vector<8x1xf32>
    %79 = tpu.reciprocal %78 {approx = true} : vector<8x1xf32> -> vector<8x1xf32>
    %80 = vector.broadcast %79 : vector<8x1xf32> to vector<8x8xf32>
    %81 = arith.mulf %76, %80 : vector<8x8xf32>
    %cst_36 = arith.constant dense<0.000000e+00> : vector<8x8xf32>
    %82 = tpu.matmul %81, %70, %cst_36 {dimension_numbers = #tpu.dot_dimension_numbers<[1], [0], [0], [1], [0, 0, 1, 1], [], []>} : vector<8x8xf32>, vector<8x8xf32>, vector<8x8xf32> -> vector<8x8xf32>
    %c0_37 = arith.constant 0 : index
    %c3 = arith.constant 3 : index
    %c0_38 = arith.constant 0 : index
    %c0_39 = arith.constant 0 : index
    %83 = vector.load %arg5[%c0_37, %c3, %c0_38, %c0_39] : memref<1x4x8x8xf32, #tpu.memory_space<vmem>>, vector<1x1x8x8xf32>
    %84 = vector.shape_cast %83 : vector<1x1x8x8xf32> to vector<8x8xf32>
    %85 = vector.shape_cast %81 : vector<8x8xf32> to vector<1x1x8x8xf32>
    tpu.vector_store %arg5[%c0_37, %c3, %c0_38, %c0_39], %85 {strides = array<i32>} : memref<1x4x8x8xf32, #tpu.memory_space<vmem>>, vector<1x1x8x8xf32>,
    %86 = tpu.concatenate %22, %42, %62, %82 in 1 : vector<8x8xf32>, vector<8x8xf32>, vector<8x8xf32>, vector<8x8xf32> -> vector<8x32xf32>
    %c0_40 = arith.constant 0 : index
    %c0_41 = arith.constant 0 : index
    %c0_42 = arith.constant 0 : index
    %87 = vector.load %arg4[%c0_40, %c0_41, %c0_42] : memref<1x8x32xf32, #tpu.memory_space<vmem>>, vector<1x8x32xf32>
    %88 = vector.shape_cast %87 : vector<1x8x32xf32> to vector<8x32xf32>
    %89 = vector.shape_cast %86 : vector<8x32xf32> to vector<1x8x32xf32>
    tpu.vector_store %arg4[%c0_40, %c0_41, %c0_42], %89 {strides = array<i32>} : memref<1x8x32xf32, #tpu.memory_space<vmem>>, vector<1x8x32xf32>,
    return
  }
  func.func @transform_0(%arg0: i32) -> (i32, i32, i32) {
    %c0_i32 = arith.constant 0 : i32
    %c0_i32_0 = arith.constant 0 : i32
    %c0_i32_1 = arith.constant 0 : i32
    return %arg0, %c0_i32, %c0_i32_0 : i32, i32, i32
  }
  func.func @transform_1(%arg0: i32) -> (i32, i32, i32) {
    %c0_i32 = arith.constant 0 : i32
    %c0_i32_0 = arith.constant 0 : i32
    %c0_i32_1 = arith.constant 0 : i32
    return %arg0, %c0_i32, %c0_i32_0 : i32, i32, i32
  }
  func.func @transform_2(%arg0: i32) -> (i32, i32, i32) {
    %c0_i32 = arith.constant 0 : i32
    %c0_i32_0 = arith.constant 0 : i32
    %c0_i32_1 = arith.constant 0 : i32
    return %arg0, %c0_i32, %c0_i32_0 : i32, i32, i32
  }
  func.func @transform_3(%arg0: i32) -> (i32, i32, i32) {
    %c0_i32 = arith.constant 0 : i32
    %c0_i32_0 = arith.constant 0 : i32
    %c0_i32_1 = arith.constant 0 : i32
    return %arg0, %c0_i32, %c0_i32_0 : i32, i32, i32
  }
  func.func @transform_4(%arg0: i32) -> (i32, i32, i32, i32) {
    %c0_i32 = arith.constant 0 : i32
    %c0_i32_0 = arith.constant 0 : i32
    %c0_i32_1 = arith.constant 0 : i32
    %c0_i32_2 = arith.constant 0 : i32
    return %arg0, %c0_i32, %c0_i32_0, %c0_i32_1 : i32, i32, i32, i32
  }
}

module attributes {stable_mosaic.version = 11 : i64} {
  func.func @_qkv_proj_kernel(%arg0: i32, %arg1: i32, %arg2: i32, %arg3: memref<16x32xf32, #tpu.memory_space<vmem>>, %arg4: memref<16x32xf32, #tpu.memory_space<vmem>>, %arg5: memref<16x32xf32, #tpu.memory_space<vmem>>, %arg6: memref<32x32xf32, #tpu.memory_space<vmem>>, %arg7: memref<32x32xf32, #tpu.memory_space<vmem>>, %arg8: memref<32x32xf32, #tpu.memory_space<vmem>>, %arg9: memref<1x32xf32, #tpu.memory_space<vmem>>, %arg10: memref<1x32xf32, #tpu.memory_space<vmem>>, %arg11: memref<1x32xf32, #tpu.memory_space<vmem>>, %arg12: memref<16x32xf32, #tpu.memory_space<vmem>>, %arg13: memref<16x32xf32, #tpu.memory_space<vmem>>, %arg14: memref<16x32xf32, #tpu.memory_space<vmem>>, %arg15: memref<3x16x32xf32, #tpu.memory_space<vmem>>) attributes {dimension_semantics = [#tpu.dimension_semantics<parallel>, #tpu.dimension_semantics<parallel>, #tpu.dimension_semantics<arbitrary>], iteration_bounds = array<i64: 1, 1, 1>, scalar_prefetch = 0 : i64, scratch_operands = 1 : i64, tpu.core_type = #tpu.core_type<tc>, window_params = [{transform_indices = @transform_0, window_bounds = array<i64: 16, 32>}, {transform_indices = @transform_1, window_bounds = array<i64: 16, 32>}, {transform_indices = @transform_2, window_bounds = array<i64: 16, 32>}, {transform_indices = @transform_3, window_bounds = array<i64: 32, 32>}, {transform_indices = @transform_4, window_bounds = array<i64: 32, 32>}, {transform_indices = @transform_5, window_bounds = array<i64: 32, 32>}, {transform_indices = @transform_6, window_bounds = array<i64: 1, 32>}, {transform_indices = @transform_7, window_bounds = array<i64: 1, 32>}, {transform_indices = @transform_8, window_bounds = array<i64: 1, 32>}, {transform_indices = @transform_9, window_bounds = array<i64: 16, 32>}, {transform_indices = @transform_10, window_bounds = array<i64: 16, 32>}, {transform_indices = @transform_11, window_bounds = array<i64: 16, 32>}]} {
    %c0_i32 = arith.constant 0 : i32
    %0 = arith.cmpi eq, %arg2, %c0_i32 : i32
    %1 = arith.extui %0 : i1 to i32
    %c0_i32_0 = arith.constant 0 : i32
    %2 = arith.cmpi ne, %1, %c0_i32_0 : i32
    scf.if %2 {
      %cst_32 = arith.constant 0.000000e+00 : f32
      %33 = vector.broadcast %cst_32 : f32 to vector<3x16x32xf32>
      %c0_33 = arith.constant 0 : index
      %c0_34 = arith.constant 0 : index
      %c0_35 = arith.constant 0 : index
      %34 = vector.load %arg15[%c0_33, %c0_34, %c0_35] : memref<3x16x32xf32, #tpu.memory_space<vmem>>, vector<3x16x32xf32>
      tpu.vector_store %arg15[%c0_33, %c0_34, %c0_35], %33 {strides = array<i32>} : memref<3x16x32xf32, #tpu.memory_space<vmem>>, vector<3x16x32xf32>,
    } else {
    }
    %c0 = arith.constant 0 : index
    %c0_1 = arith.constant 0 : index
    %c0_2 = arith.constant 0 : index
    %3 = vector.load %arg15[%c0, %c0_1, %c0_2] : memref<3x16x32xf32, #tpu.memory_space<vmem>>, vector<1x16x32xf32>
    %4 = vector.shape_cast %3 : vector<1x16x32xf32> to vector<16x32xf32>
    %c0_3 = arith.constant 0 : index
    %c0_4 = arith.constant 0 : index
    %5 = vector.load %arg3[%c0_3, %c0_4] : memref<16x32xf32, #tpu.memory_space<vmem>>, vector<16x32xf32>
    %c0_5 = arith.constant 0 : index
    %c0_6 = arith.constant 0 : index
    %6 = vector.load %arg6[%c0_5, %c0_6] : memref<32x32xf32, #tpu.memory_space<vmem>>, vector<32x32xf32>
    %cst = arith.constant dense<0.000000e+00> : vector<16x32xf32>
    %7 = tpu.matmul %5, %6, %cst {dimension_numbers = #tpu.dot_dimension_numbers<[1], [0], [0], [1], [0, 0, 1, 1], [], []>} : vector<16x32xf32>, vector<32x32xf32>, vector<16x32xf32> -> vector<16x32xf32>
    %8 = arith.addf %4, %7 : vector<16x32xf32>
    %c0_7 = arith.constant 0 : index
    %c0_8 = arith.constant 0 : index
    %c0_9 = arith.constant 0 : index
    %9 = vector.load %arg15[%c0_7, %c0_8, %c0_9] : memref<3x16x32xf32, #tpu.memory_space<vmem>>, vector<1x16x32xf32>
    %10 = vector.shape_cast %9 : vector<1x16x32xf32> to vector<16x32xf32>
    %11 = vector.shape_cast %8 : vector<16x32xf32> to vector<1x16x32xf32>
    tpu.vector_store %arg15[%c0_7, %c0_8, %c0_9], %11 {strides = array<i32>} : memref<3x16x32xf32, #tpu.memory_space<vmem>>, vector<1x16x32xf32>,
    %c1 = arith.constant 1 : index
    %c0_10 = arith.constant 0 : index
    %c0_11 = arith.constant 0 : index
    %12 = vector.load %arg15[%c1, %c0_10, %c0_11] : memref<3x16x32xf32, #tpu.memory_space<vmem>>, vector<1x16x32xf32>
    %13 = vector.shape_cast %12 : vector<1x16x32xf32> to vector<16x32xf32>
    %c0_12 = arith.constant 0 : index
    %c0_13 = arith.constant 0 : index
    %14 = vector.load %arg4[%c0_12, %c0_13] : memref<16x32xf32, #tpu.memory_space<vmem>>, vector<16x32xf32>
    %c0_14 = arith.constant 0 : index
    %c0_15 = arith.constant 0 : index
    %15 = vector.load %arg7[%c0_14, %c0_15] : memref<32x32xf32, #tpu.memory_space<vmem>>, vector<32x32xf32>
    %cst_16 = arith.constant dense<0.000000e+00> : vector<16x32xf32>
    %16 = tpu.matmul %14, %15, %cst_16 {dimension_numbers = #tpu.dot_dimension_numbers<[1], [0], [0], [1], [0, 0, 1, 1], [], []>} : vector<16x32xf32>, vector<32x32xf32>, vector<16x32xf32> -> vector<16x32xf32>
    %17 = arith.addf %13, %16 : vector<16x32xf32>
    %c1_17 = arith.constant 1 : index
    %c0_18 = arith.constant 0 : index
    %c0_19 = arith.constant 0 : index
    %18 = vector.load %arg15[%c1_17, %c0_18, %c0_19] : memref<3x16x32xf32, #tpu.memory_space<vmem>>, vector<1x16x32xf32>
    %19 = vector.shape_cast %18 : vector<1x16x32xf32> to vector<16x32xf32>
    %20 = vector.shape_cast %17 : vector<16x32xf32> to vector<1x16x32xf32>
    tpu.vector_store %arg15[%c1_17, %c0_18, %c0_19], %20 {strides = array<i32>} : memref<3x16x32xf32, #tpu.memory_space<vmem>>, vector<1x16x32xf32>,
    %c2 = arith.constant 2 : index
    %c0_20 = arith.constant 0 : index
    %c0_21 = arith.constant 0 : index
    %21 = vector.load %arg15[%c2, %c0_20, %c0_21] : memref<3x16x32xf32, #tpu.memory_space<vmem>>, vector<1x16x32xf32>
    %22 = vector.shape_cast %21 : vector<1x16x32xf32> to vector<16x32xf32>
    %c0_22 = arith.constant 0 : index
    %c0_23 = arith.constant 0 : index
    %23 = vector.load %arg5[%c0_22, %c0_23] : memref<16x32xf32, #tpu.memory_space<vmem>>, vector<16x32xf32>
    %c0_24 = arith.constant 0 : index
    %c0_25 = arith.constant 0 : index
    %24 = vector.load %arg8[%c0_24, %c0_25] : memref<32x32xf32, #tpu.memory_space<vmem>>, vector<32x32xf32>
    %cst_26 = arith.constant dense<0.000000e+00> : vector<16x32xf32>
    %25 = tpu.matmul %23, %24, %cst_26 {dimension_numbers = #tpu.dot_dimension_numbers<[1], [0], [0], [1], [0, 0, 1, 1], [], []>} : vector<16x32xf32>, vector<32x32xf32>, vector<16x32xf32> -> vector<16x32xf32>
    %26 = arith.addf %22, %25 : vector<16x32xf32>
    %c2_27 = arith.constant 2 : index
    %c0_28 = arith.constant 0 : index
    %c0_29 = arith.constant 0 : index
    %27 = vector.load %arg15[%c2_27, %c0_28, %c0_29] : memref<3x16x32xf32, #tpu.memory_space<vmem>>, vector<1x16x32xf32>
    %28 = vector.shape_cast %27 : vector<1x16x32xf32> to vector<16x32xf32>
    %29 = vector.shape_cast %26 : vector<16x32xf32> to vector<1x16x32xf32>
    tpu.vector_store %arg15[%c2_27, %c0_28, %c0_29], %29 {strides = array<i32>} : memref<3x16x32xf32, #tpu.memory_space<vmem>>, vector<1x16x32xf32>,
    %c0_i32_30 = arith.constant 0 : i32
    %30 = arith.cmpi eq, %arg2, %c0_i32_30 : i32
    %31 = arith.extui %30 : i1 to i32
    %c0_i32_31 = arith.constant 0 : i32
    %32 = arith.cmpi ne, %31, %c0_i32_31 : i32
    scf.if %32 {
      %c0_32 = arith.constant 0 : index
      %c0_33 = arith.constant 0 : index
      %c0_34 = arith.constant 0 : index
      %33 = vector.load %arg15[%c0_32, %c0_33, %c0_34] : memref<3x16x32xf32, #tpu.memory_space<vmem>>, vector<1x16x32xf32>
      %34 = vector.shape_cast %33 : vector<1x16x32xf32> to vector<16x32xf32>
      %c0_35 = arith.constant 0 : index
      %c0_36 = arith.constant 0 : index
      %35 = vector.load %arg9[%c0_35, %c0_36] : memref<1x32xf32, #tpu.memory_space<vmem>>, vector<1x32xf32>
      %36 = vector.broadcast %35 : vector<1x32xf32> to vector<16x32xf32>
      %37 = arith.addf %34, %36 : vector<16x32xf32>
      %c0_37 = arith.constant 0 : index
      %c0_38 = arith.constant 0 : index
      %38 = vector.load %arg12[%c0_37, %c0_38] : memref<16x32xf32, #tpu.memory_space<vmem>>, vector<16x32xf32>
      tpu.vector_store %arg12[%c0_37, %c0_38], %37 {strides = array<i32>} : memref<16x32xf32, #tpu.memory_space<vmem>>, vector<16x32xf32>,
      %c1_39 = arith.constant 1 : index
      %c0_40 = arith.constant 0 : index
      %c0_41 = arith.constant 0 : index
      %39 = vector.load %arg15[%c1_39, %c0_40, %c0_41] : memref<3x16x32xf32, #tpu.memory_space<vmem>>, vector<1x16x32xf32>
      %40 = vector.shape_cast %39 : vector<1x16x32xf32> to vector<16x32xf32>
      %c0_42 = arith.constant 0 : index
      %c0_43 = arith.constant 0 : index
      %41 = vector.load %arg10[%c0_42, %c0_43] : memref<1x32xf32, #tpu.memory_space<vmem>>, vector<1x32xf32>
      %42 = vector.broadcast %41 : vector<1x32xf32> to vector<16x32xf32>
      %43 = arith.addf %40, %42 : vector<16x32xf32>
      %c0_44 = arith.constant 0 : index
      %c0_45 = arith.constant 0 : index
      %44 = vector.load %arg13[%c0_44, %c0_45] : memref<16x32xf32, #tpu.memory_space<vmem>>, vector<16x32xf32>
      tpu.vector_store %arg13[%c0_44, %c0_45], %43 {strides = array<i32>} : memref<16x32xf32, #tpu.memory_space<vmem>>, vector<16x32xf32>,
      %c2_46 = arith.constant 2 : index
      %c0_47 = arith.constant 0 : index
      %c0_48 = arith.constant 0 : index
      %45 = vector.load %arg15[%c2_46, %c0_47, %c0_48] : memref<3x16x32xf32, #tpu.memory_space<vmem>>, vector<1x16x32xf32>
      %46 = vector.shape_cast %45 : vector<1x16x32xf32> to vector<16x32xf32>
      %c0_49 = arith.constant 0 : index
      %c0_50 = arith.constant 0 : index
      %47 = vector.load %arg11[%c0_49, %c0_50] : memref<1x32xf32, #tpu.memory_space<vmem>>, vector<1x32xf32>
      %48 = vector.broadcast %47 : vector<1x32xf32> to vector<16x32xf32>
      %49 = arith.addf %46, %48 : vector<16x32xf32>
      %c0_51 = arith.constant 0 : index
      %c0_52 = arith.constant 0 : index
      %50 = vector.load %arg14[%c0_51, %c0_52] : memref<16x32xf32, #tpu.memory_space<vmem>>, vector<16x32xf32>
      tpu.vector_store %arg14[%c0_51, %c0_52], %49 {strides = array<i32>} : memref<16x32xf32, #tpu.memory_space<vmem>>, vector<16x32xf32>,
    } else {
    }
    return
  }
  func.func @transform_0(%arg0: i32, %arg1: i32, %arg2: i32) -> (i32, i32) {
    %c0_i32 = arith.constant 0 : i32
    return %arg0, %arg2 : i32, i32
  }
  func.func @transform_1(%arg0: i32, %arg1: i32, %arg2: i32) -> (i32, i32) {
    %c0_i32 = arith.constant 0 : i32
    return %arg0, %arg2 : i32, i32
  }
  func.func @transform_2(%arg0: i32, %arg1: i32, %arg2: i32) -> (i32, i32) {
    %c0_i32 = arith.constant 0 : i32
    return %arg0, %arg2 : i32, i32
  }
  func.func @transform_3(%arg0: i32, %arg1: i32, %arg2: i32) -> (i32, i32) {
    %c0_i32 = arith.constant 0 : i32
    return %arg2, %arg1 : i32, i32
  }
  func.func @transform_4(%arg0: i32, %arg1: i32, %arg2: i32) -> (i32, i32) {
    %c0_i32 = arith.constant 0 : i32
    return %arg2, %arg1 : i32, i32
  }
  func.func @transform_5(%arg0: i32, %arg1: i32, %arg2: i32) -> (i32, i32) {
    %c0_i32 = arith.constant 0 : i32
    return %arg2, %arg1 : i32, i32
  }
  func.func @transform_6(%arg0: i32, %arg1: i32, %arg2: i32) -> (i32, i32) {
    %c0_i32 = arith.constant 0 : i32
    %c0_i32_0 = arith.constant 0 : i32
    return %c0_i32, %arg1 : i32, i32
  }
  func.func @transform_7(%arg0: i32, %arg1: i32, %arg2: i32) -> (i32, i32) {
    %c0_i32 = arith.constant 0 : i32
    %c0_i32_0 = arith.constant 0 : i32
    return %c0_i32, %arg1 : i32, i32
  }
  func.func @transform_8(%arg0: i32, %arg1: i32, %arg2: i32) -> (i32, i32) {
    %c0_i32 = arith.constant 0 : i32
    %c0_i32_0 = arith.constant 0 : i32
    return %c0_i32, %arg1 : i32, i32
  }
  func.func @transform_9(%arg0: i32, %arg1: i32, %arg2: i32) -> (i32, i32) {
    %c0_i32 = arith.constant 0 : i32
    return %arg0, %arg1 : i32, i32
  }
  func.func @transform_10(%arg0: i32, %arg1: i32, %arg2: i32) -> (i32, i32) {
    %c0_i32 = arith.constant 0 : i32
    return %arg0, %arg1 : i32, i32
  }
  func.func @transform_11(%arg0: i32, %arg1: i32, %arg2: i32) -> (i32, i32) {
    %c0_i32 = arith.constant 0 : i32
    return %arg0, %arg1 : i32, i32
  }
}

</mosaic_0001>

<llo_original>
// kernel: self_attention_forward.3
$region0: #{self_attention_forward.3}
  #allocation0 [shape = 'u32[]', space=smem, size = 0x4, offset = 0x4, fixed_abs, tag = 'smem constant byte address 0x4 - core index']
  #allocation1 [shape = 'u32[72,128]{1,0:T(1,128)}', space=vmem, size = 0x9000, scoped, tag = 'internal scratch']
  #allocation2 [shape = 'f32[3,16,32]{2,1,0:T(8,128)}', space=vmem, size = 0x6000, scoped, tag = 'scratch operand']
  %s0 = inlined_call_operand.hbm [shape: f32[16,32], index: 0, kind: input, shape index: {}]
  %s1 = inlined_call_operand.hbm [shape: f32[16,32], index: 1, kind: input, shape index: {}]
  %s2 = inlined_call_operand.hbm [shape: f32[16,32], index: 2, kind: input, shape index: {}]
  %s3 = inlined_call_operand.hbm [shape: f32[32,32], index: 3, kind: input, shape index: {}]
  %s4 = inlined_call_operand.hbm [shape: f32[32,32], index: 4, kind: input, shape index: {}]
  %s5 = inlined_call_operand.hbm [shape: f32[32,32], index: 5, kind: input, shape index: {}]
  %s6 = inlined_call_operand.vmem [shape: f32[1,32], index: 6, kind: input, shape index: {}]
  %s7 = inlined_call_operand.vmem [shape: f32[1,32], index: 7, kind: input, shape index: {}]
  %s8 = inlined_call_operand.vmem [shape: f32[1,32], index: 8, kind: input, shape index: {}]
  %s9 = inlined_call_operand.vmem [shape: f32[16,32], index: 9, kind: output, shape index: {0}]
  %s10 = inlined_call_operand.vmem [shape: f32[16,32], index: 10, kind: output, shape index: {1}]
  %s11 = inlined_call_operand.vmem [shape: f32[16,32], index: 11, kind: output, shape index: {2}]
  %12 = xla_tuple %s9, %s10, %s11
  %s13 = sld [smem:[#allocation0]]
  $region94: #{self_attention_forward.3} parent=0
    _
  %s15 = ssub.s32 1, %s13
  %s16 = scalar_select 0, %s15, %s13
  $region1: #{self_attention_forward.3} parent=0
    #allocation3 [shape = 'u8[8192]{0}', space=vmem, size = 0x2000, scoped, tag = 'input window, operand 0, single buffered']
    #allocation4 [shape = 's32[1]{0}', space=sflag, size = 0x4, scoped, tag = 'scoped memory for self_attention_forward.3']
    #allocation5 [shape = 'u8[8192]{0}', space=vmem, size = 0x2000, scoped, tag = 'input window, operand 1, single buffered']
    #allocation6 [shape = 's32[1]{0}', space=sflag, size = 0x4, scoped, tag = 'scoped memory for self_attention_forward.3']
    #allocation7 [shape = 'u8[8192]{0}', space=vmem, size = 0x2000, scoped, tag = 'input window, operand 2, single buffered']
    #allocation8 [shape = 'u8[16384]{0}', space=vmem, size = 0x4000, scoped, tag = 'input window, operand 3, single buffered']
    #allocation9 [shape = 's32[1]{0}', space=sflag, size = 0x4, scoped, tag = 'scoped memory for self_attention_forward.3']
    #allocation10 [shape = 'u8[16384]{0}', space=vmem, size = 0x4000, scoped, tag = 'input window, operand 4, single buffered']
    #allocation11 [shape = 'u8[16384]{0}', space=vmem, size = 0x4000, scoped, tag = 'input window, operand 5, single buffered']
    #allocation12 [shape = 's32[1]{0}', space=sflag, size = 0x4, scoped, tag = 'scoped memory for self_attention_forward.3']
    %17 = vsyncpa [#allocation4], 0
    %18 = vsyncpa [#allocation6], 0
    %19 = vsyncpa [#allocation9], 0
    %20 = vsyncpa [#allocation12], 0
    // Predicated region
    $region2: #{self_attention_forward.3} parent=1 // pred_check
      _
    $region3: #{self_attention_forward.3} parent=1 // pred_check_branch
      %22 = sbr.rel (0) target = $region5
    $region4: #{self_attention_forward.3} parent=1 // pred_region
      %24 = vsyncadd [#allocation4], 0
      %s25 = sshll.u32 %s0, 4
      %s26 = int_to_ptr.hbm [resolvable:$true] %s25
      %s27 = sshll.u32 [#allocation3], 4
      %s28 = int_to_ptr.vmem [resolvable:$true] %s27
      %33 = dma.hbm_to_vmem [thread:$0]  %s26, 256, %s28, [#allocation4], 128, 128, 8
    $region5: #{self_attention_forward.3} parent=1 // pred_fallthru
      _
    // Predicated region
    $region6: #{self_attention_forward.3} parent=1 // pred_check
      _
    $region7: #{self_attention_forward.3} parent=1 // pred_check_branch
      %35 = sbr.rel (0) target = $region9
    $region8: #{self_attention_forward.3} parent=1 // pred_region
      %37 = vsyncadd [#allocation6], 0
      %s38 = sshll.u32 %s1, 4
      %s39 = int_to_ptr.hbm [resolvable:$true] %s38
      %s40 = sshll.u32 [#allocation5], 4
      %s41 = int_to_ptr.vmem [resolvable:$true] %s40
      %46 = dma.hbm_to_vmem [thread:$0]  %s39, 256, %s41, [#allocation6], 128, 128, 8
    $region9: #{self_attention_forward.3} parent=1 // pred_fallthru
      _
    // Predicated region
    $region10: #{self_attention_forward.3} parent=1 // pred_check
      _
    $region11: #{self_attention_forward.3} parent=1 // pred_check_branch
      %48 = sbr.rel (0) target = $region13
    $region12: #{self_attention_forward.3} parent=1 // pred_region
      %50 = vsyncadd [#allocation6], 0
      %s51 = sshll.u32 %s2, 4
      %s52 = int_to_ptr.hbm [resolvable:$true] %s51
      %s53 = sshll.u32 [#allocation7], 4
      %s54 = int_to_ptr.vmem [resolvable:$true] %s53
      %59 = dma.hbm_to_vmem [thread:$0]  %s52, 256, %s54, [#allocation6], 128, 128, 8
    $region13: #{self_attention_forward.3} parent=1 // pred_fallthru
      _
    // Predicated region
    $region14: #{self_attention_forward.3} parent=1 // pred_check
      _
    $region15: #{self_attention_forward.3} parent=1 // pred_check_branch
      %61 = sbr.rel (0) target = $region17
    $region16: #{self_attention_forward.3} parent=1 // pred_region
      %63 = vsyncadd [#allocation9], 0
      %s64 = sshll.u32 %s3, 4
      %s65 = int_to_ptr.hbm [resolvable:$true] %s64
      %s66 = sshll.u32 [#allocation8], 4
      %s67 = int_to_ptr.vmem [resolvable:$true] %s66
      %72 = dma.hbm_to_vmem [thread:$0]  %s65, 512, %s67, [#allocation9], 128, 128, 8
    $region17: #{self_attention_forward.3} parent=1 // pred_fallthru
      _
    // Predicated region
    $region18: #{self_attention_forward.3} parent=1 // pred_check
      _
    $region19: #{self_attention_forward.3} parent=1 // pred_check_branch
      %74 = sbr.rel (0) target = $region21
    $region20: #{self_attention_forward.3} parent=1 // pred_region
      %76 = vsyncadd [#allocation9], 0
      %s77 = sshll.u32 %s4, 4
      %s78 = int_to_ptr.hbm [resolvable:$true] %s77
      %s79 = sshll.u32 [#allocation10], 4
      %s80 = int_to_ptr.vmem [resolvable:$true] %s79
      %85 = dma.hbm_to_vmem [thread:$0]  %s78, 512, %s80, [#allocation9], 128, 128, 8
    $region21: #{self_attention_forward.3} parent=1 // pred_fallthru
      _
    // Predicated region
    $region22: #{self_attention_forward.3} parent=1 // pred_check
      _
    $region23: #{self_attention_forward.3} parent=1 // pred_check_branch
      %87 = sbr.rel (0) target = $region25
    $region24: #{self_attention_forward.3} parent=1 // pred_region
      %89 = vsyncadd [#allocation12], 0
      %s90 = sshll.u32 %s5, 4
      %s91 = int_to_ptr.hbm [resolvable:$true] %s90
      %s92 = sshll.u32 [#allocation11], 4
      %s93 = int_to_ptr.vmem [resolvable:$true] %s92
      %98 = dma.hbm_to_vmem [thread:$0]  %s91, 512, %s93, [#allocation12], 128, 128, 8
    $region25: #{self_attention_forward.3} parent=1 // pred_fallthru
      _
    // Predicated region
    $region26: #{self_attention_forward.3} parent=1 // pred_check
      _
    $region27: #{self_attention_forward.3} parent=1 // pred_check_branch
      %100 = sbr.rel (0) target = $region29
    $region28: #{self_attention_forward.3} parent=1 // pred_region
      _
    $region29: #{self_attention_forward.3} parent=1 // pred_fallthru
      _
    // Predicated region
    $region30: #{self_attention_forward.3} parent=1 // pred_check
      _
    $region31: #{self_attention_forward.3} parent=1 // pred_check_branch
      %102 = sbr.rel (0) target = $region33
    $region32: #{self_attention_forward.3} parent=1 // pred_region
      _
    $region33: #{self_attention_forward.3} parent=1 // pred_fallthru
      _
    // Predicated region
    $region34: #{self_attention_forward.3} parent=1 // pred_check
      _
    $region35: #{self_attention_forward.3} parent=1 // pred_check_branch
      %104 = sbr.rel (0) target = $region37
    $region36: #{self_attention_forward.3} parent=1 // pred_region
      _
    $region37: #{self_attention_forward.3} parent=1 // pred_fallthru
      _
    // Predicated region
    $region38: #{self_attention_forward.3} parent=1 // pred_check
      _
    $region39: #{self_attention_forward.3} parent=1 // pred_check_branch
      %106 = sbr.rel (0) target = $region41
    $region40: #{self_attention_forward.3} parent=1 // pred_region
      %108 = dma.done [#allocation4], 256
    $region41: #{self_attention_forward.3} parent=1 // pred_fallthru
      _
    // Predicated region
    $region42: #{self_attention_forward.3} parent=1 // pred_check
      _
    $region43: #{self_attention_forward.3} parent=1 // pred_check_branch
      %110 = sbr.rel (0) target = $region45
    $region44: #{self_attention_forward.3} parent=1 // pred_region
      %112 = dma.done [#allocation6], 256
    $region45: #{self_attention_forward.3} parent=1 // pred_fallthru
      _
    // Predicated region
    $region46: #{self_attention_forward.3} parent=1 // pred_check
      _
    $region47: #{self_attention_forward.3} parent=1 // pred_check_branch
      %114 = sbr.rel (0) target = $region49
    $region48: #{self_attention_forward.3} parent=1 // pred_region
      %116 = dma.done [#allocation6], 256
    $region49: #{self_attention_forward.3} parent=1 // pred_fallthru
      _
    // Predicated region
    $region50: #{self_attention_forward.3} parent=1 // pred_check
      _
    $region51: #{self_attention_forward.3} parent=1 // pred_check_branch
      %118 = sbr.rel (0) target = $region53
    $region52: #{self_attention_forward.3} parent=1 // pred_region
      %120 = dma.done [#allocation9], 512
    $region53: #{self_attention_forward.3} parent=1 // pred_fallthru
      _
    // Predicated region
    $region54: #{self_attention_forward.3} parent=1 // pred_check
      _
    $region55: #{self_attention_forward.3} parent=1 // pred_check_branch
      %122 = sbr.rel (0) target = $region57
    $region56: #{self_attention_forward.3} parent=1 // pred_region
      %124 = dma.done [#allocation9], 512
    $region57: #{self_attention_forward.3} parent=1 // pred_fallthru
      _
    // Predicated region
    $region58: #{self_attention_forward.3} parent=1 // pred_check
      _
    $region59: #{self_attention_forward.3} parent=1 // pred_check_branch
      %126 = sbr.rel (0) target = $region61
    $region60: #{self_attention_forward.3} parent=1 // pred_region
      %128 = dma.done [#allocation12], 512
    $region61: #{self_attention_forward.3} parent=1 // pred_fallthru
      _
    %p129 = scmp.eq.s32.totalorder 0, 0
    // Predicated region
    $region62: #{self_attention_forward.3} parent=1 // pred_check
      %p130 = pneg %p129
    $region63: #{self_attention_forward.3} parent=1 // pred_check_branch
      %132 = sbr.rel (%p130) target = $region65
    $region64: #{self_attention_forward.3} parent=1 // pred_region
      %vm133 = vcmask 261120
      %134 = vst.msk [vmem:[#allocation2] sm:$0xff] %vm133, 0.0
      %135 = vst.msk [vmem:[#allocation2 + $0x8] sm:$0xff] %vm133, 0.0
      %136 = vst.msk [vmem:[#allocation2 + $0x10] sm:$0xff] %vm133, 0.0
      %137 = vst.msk [vmem:[#allocation2 + $0x18] sm:$0xff] %vm133, 0.0
      %138 = vst.msk [vmem:[#allocation2 + $0x20] sm:$0xff] %vm133, 0.0
      %139 = vst.msk [vmem:[#allocation2 + $0x28] sm:$0xff] %vm133, 0.0
    $region65: #{self_attention_forward.3} parent=1 // pred_fallthru
      _
    %v140 = vld [vmem:[#allocation2] sm:$0xff]
    %v141 = vld [vmem:[#allocation2 + $0x8] sm:$0xff]
    %v142 = vld [vmem:[#allocation3] sm:$0xff]
    %v143 = vld [vmem:[#allocation3 + $0x8] sm:$0xff]
    %v144 = vld [vmem:[#allocation8] sm:$0xff]
    %v145 = vld [vmem:[#allocation8 + $0x8] sm:$0xff]
    %v146 = vld [vmem:[#allocation8 + $0x10] sm:$0xff]
    %v147 = vld [vmem:[#allocation8 + $0x18] sm:$0xff]
    %vm148 = vcmask 261120
    %v150 = vsel %vm148, %v142, 0
    %v153 = vsel %vm148, %v143, 0
    %155 = vmatpush.msra.mxu0 0.0
    %156 = vmatpush.msra.mxu0 0.0
    %157 = vmatpush.msra.mxu0 0.0
    %158 = vmatpush.msra.mxu0 0.0
    %159 = vmatpush.msra.mxu0 0.0
    %160 = vmatpush.msra.mxu0 0.0
    %161 = vmatpush.msra.mxu0 0.0
    %162 = vmatpush.msra.mxu0 0.0
    %163 = vmatpush.msra.mxu0 0.0
    %164 = vmatpush.msra.mxu0 0.0
    %165 = vmatpush.msra.mxu0 0.0
    %166 = vmatpush.msra.mxu0 0.0
    %167 = vmatpush.msra.mxu0 %v147
    %168 = vmatpush.msra.mxu0 %v146
    %169 = vmatpush.msra.mxu0 %v145
    %170 = vmatpush.msra.mxu0 %v144
    %171 = vmatmul.f32.gmra.mxu0 %v150
    %v172 = vpop.f32.mrf.mxu0
    %v173 = vadd.f32 0.0, %v172
    %174 = vmatmul.f32.gmra.mxu0 %v153
    %v175 = vpop.f32.mrf.mxu0
    %v176 = vadd.f32 0.0, %v175
    %177 = vdwg.mxu0
    %v178 = vadd.f32 %v140, %v173
    %v179 = vadd.f32 %v141, %v176
    %180 = vst.msk [vmem:[#allocation2] sm:$0xff] %vm148, %v178
    %181 = vst.msk [vmem:[#allocation2 + $0x8] sm:$0xff] %vm148, %v179
    %s182 = scalar_lea.vmem [#allocation2], 16
    %v183 = vld [vmem:[%s182] sm:$0xff]
    %v184 = vld [vmem:[%s182 + $0x8] sm:$0xff]
    %v185 = vld [vmem:[#allocation5] sm:$0xff]
    %v186 = vld [vmem:[#allocation5 + $0x8] sm:$0xff]
    %v187 = vld [vmem:[#allocation10] sm:$0xff]
    %v188 = vld [vmem:[#allocation10 + $0x8] sm:$0xff]
    %v189 = vld [vmem:[#allocation10 + $0x10] sm:$0xff]
    %v190 = vld [vmem:[#allocation10 + $0x18] sm:$0xff]
    %v192 = vsel %vm148, %v185, 0
    %v195 = vsel %vm148, %v186, 0
    %197 = vmatpush.msra.mxu0 0.0
    %198 = vmatpush.msra.mxu0 0.0
    %199 = vmatpush.msra.mxu0 0.0
    %200 = vmatpush.msra.mxu0 0.0
    %201 = vmatpush.msra.mxu0 0.0
    %202 = vmatpush.msra.mxu0 0.0
    %203 = vmatpush.msra.mxu0 0.0
    %204 = vmatpush.msra.mxu0 0.0
    %205 = vmatpush.msra.mxu0 0.0
    %206 = vmatpush.msra.mxu0 0.0
    %207 = vmatpush.msra.mxu0 0.0
    %208 = vmatpush.msra.mxu0 0.0
    %209 = vmatpush.msra.mxu0 %v190
    %210 = vmatpush.msra.mxu0 %v189
    %211 = vmatpush.msra.mxu0 %v188
    %212 = vmatpush.msra.mxu0 %v187
    %213 = vmatmul.f32.gmra.mxu0 %v192
    %v214 = vpop.f32.mrf.mxu0
    %v215 = vadd.f32 0.0, %v214
    %216 = vmatmul.f32.gmra.mxu0 %v195
    %v217 = vpop.f32.mrf.mxu0
    %v218 = vadd.f32 0.0, %v217
    %219 = vdwg.mxu0
    %v220 = vadd.f32 %v183, %v215
    %v221 = vadd.f32 %v184, %v218
    %222 = vst.msk [vmem:[%s182] sm:$0xff] %vm148, %v220
    %223 = vst.msk [vmem:[%s182 + $0x8] sm:$0xff] %vm148, %v221
    %s224 = scalar_lea.vmem [#allocation2], 32
    %v225 = vld [vmem:[%s224] sm:$0xff]
    %v226 = vld [vmem:[%s224 + $0x8] sm:$0xff]
    %v227 = vld [vmem:[#allocation7] sm:$0xff]
    %v228 = vld [vmem:[#allocation7 + $0x8] sm:$0xff]
    %v229 = vld [vmem:[#allocation11] sm:$0xff]
    %v230 = vld [vmem:[#allocation11 + $0x8] sm:$0xff]
    %v231 = vld [vmem:[#allocation11 + $0x10] sm:$0xff]
    %v232 = vld [vmem:[#allocation11 + $0x18] sm:$0xff]
    %v234 = vsel %vm148, %v227, 0
    %v237 = vsel %vm148, %v228, 0
    %239 = vmatpush.msra.mxu0 0.0
    %240 = vmatpush.msra.mxu0 0.0
    %241 = vmatpush.msra.mxu0 0.0
    %242 = vmatpush.msra.mxu0 0.0
    %243 = vmatpush.msra.mxu0 0.0
    %244 = vmatpush.msra.mxu0 0.0
    %245 = vmatpush.msra.mxu0 0.0
    %246 = vmatpush.msra.mxu0 0.0
    %247 = vmatpush.msra.mxu0 0.0
    %248 = vmatpush.msra.mxu0 0.0
    %249 = vmatpush.msra.mxu0 0.0
    %250 = vmatpush.msra.mxu0 0.0
    %251 = vmatpush.msra.mxu0 %v232
    %252 = vmatpush.msra.mxu0 %v231
    %253 = vmatpush.msra.mxu0 %v230
    %254 = vmatpush.msra.mxu0 %v229
    %255 = vmatmul.f32.gmra.mxu0 %v234
    %v256 = vpop.f32.mrf.mxu0
    %v257 = vadd.f32 0.0, %v256
    %258 = vmatmul.f32.gmra.mxu0 %v237
    %v259 = vpop.f32.mrf.mxu0
    %v260 = vadd.f32 0.0, %v259
    %261 = vdwg.mxu0
    %v262 = vadd.f32 %v225, %v257
    %v263 = vadd.f32 %v226, %v260
    %264 = vst.msk [vmem:[%s224] sm:$0xff] %vm148, %v262
    %265 = vst.msk [vmem:[%s224 + $0x8] sm:$0xff] %vm148, %v263
    // Predicated region
    $region66: #{self_attention_forward.3} parent=1 // pred_check
      %p266 = pneg %p129
    $region67: #{self_attention_forward.3} parent=1 // pred_check_branch
      %268 = sbr.rel (%p266) target = $region69
    $region68: #{self_attention_forward.3} parent=1 // pred_region
      %v269 = vld [vmem:[#allocation2] sm:$0xff]
      %v270 = vld [vmem:[#allocation2 + $0x8] sm:$0xff]
      %v271 = vld [vmem:[%s6] sm:$0x1]
      %v273 = vperm.slane %v271, 0
      %v275 = vadd.f32 %v269, %v273
      %v276 = vadd.f32 %v270, %v273
      %277 = vst.msk [vmem:[%s9] sm:$0xff] %vm148, %v275
      %278 = vst.msk [vmem:[%s9 + $0x8] sm:$0xff] %vm148, %v276
      %v279 = vld [vmem:[%s182] sm:$0xff]
      %v280 = vld [vmem:[%s182 + $0x8] sm:$0xff]
      %v281 = vld [vmem:[%s7] sm:$0x1]
      %v283 = vperm.slane %v281, 0
      %v285 = vadd.f32 %v279, %v283
      %v286 = vadd.f32 %v280, %v283
      %287 = vst.msk [vmem:[%s10] sm:$0xff] %vm148, %v285
      %288 = vst.msk [vmem:[%s10 + $0x8] sm:$0xff] %vm148, %v286
      %v289 = vld [vmem:[%s224] sm:$0xff]
      %v290 = vld [vmem:[%s224 + $0x8] sm:$0xff]
      %v291 = vld [vmem:[%s8] sm:$0x1]
      %v293 = vperm.slane %v291, 0
      %v295 = vadd.f32 %v289, %v293
      %v296 = vadd.f32 %v290, %v293
      %297 = vst.msk [vmem:[%s11] sm:$0xff] %vm148, %v295
      %298 = vst.msk [vmem:[%s11 + $0x8] sm:$0xff] %vm148, %v296
    $region69: #{self_attention_forward.3} parent=1 // pred_fallthru
      _
    // Predicated region
    $region70: #{self_attention_forward.3} parent=1 // pred_check
      _
    $region71: #{self_attention_forward.3} parent=1 // pred_check_branch
      %300 = sbr.rel (0) target = $region73
    $region72: #{self_attention_forward.3} parent=1 // pred_region
      _
    $region73: #{self_attention_forward.3} parent=1 // pred_fallthru
      _
    // Predicated region
    $region74: #{self_attention_forward.3} parent=1 // pred_check
      _
    $region75: #{self_attention_forward.3} parent=1 // pred_check_branch
      %302 = sbr.rel (0) target = $region77
    $region76: #{self_attention_forward.3} parent=1 // pred_region
      _
    $region77: #{self_attention_forward.3} parent=1 // pred_fallthru
      _
    // Predicated region
    $region78: #{self_attention_forward.3} parent=1 // pred_check
      _
    $region79: #{self_attention_forward.3} parent=1 // pred_check_branch
      %304 = sbr.rel (0) target = $region81
    $region80: #{self_attention_forward.3} parent=1 // pred_region
      _
    $region81: #{self_attention_forward.3} parent=1 // pred_fallthru
      _
    // Predicated region
    $region82: #{self_attention_forward.3} parent=1 // pred_check
      _
    $region83: #{self_attention_forward.3} parent=1 // pred_check_branch
      %306 = sbr.rel (0) target = $region85
    $region84: #{self_attention_forward.3} parent=1 // pred_region
      _
    $region85: #{self_attention_forward.3} parent=1 // pred_fallthru
      _
    // Predicated region
    $region86: #{self_attention_forward.3} parent=1 // pred_check
      _
    $region87: #{self_attention_forward.3} parent=1 // pred_check_branch
      %308 = sbr.rel (0) target = $region89
    $region88: #{self_attention_forward.3} parent=1 // pred_region
      _
    $region89: #{self_attention_forward.3} parent=1 // pred_fallthru
      _
    // Predicated region
    $region90: #{self_attention_forward.3} parent=1 // pred_check
      _
    $region91: #{self_attention_forward.3} parent=1 // pred_check_branch
      %310 = sbr.rel (0) target = $region93
    $region92: #{self_attention_forward.3} parent=1 // pred_region
      _
    $region93: #{self_attention_forward.3} parent=1 // pred_fallthru
      _
    %311 = vsyncpa [#allocation4], 1
    %312 = vsyncpa [#allocation6], 1
    %313 = vsyncpa [#allocation9], 1
    %314 = vsyncpa [#allocation12], 1

// kernel: self_attention_forward.4
$region0: #{self_attention_forward.4}
  #allocation0 [shape = 'u32[]', space=smem, size = 0x4, offset = 0x4, fixed_abs, tag = 'smem constant byte address 0x4 - core index']
  #allocation1 [shape = 'u32[72,128]{1,0:T(1,128)}', space=vmem, size = 0x9000, scoped, tag = 'internal scratch']
  %s0 = inlined_call_operand.vmem [shape: f32[2,8,32], index: 0, kind: input, shape index: {}]
  %s1 = inlined_call_operand.vmem [shape: f32[2,8,32], index: 1, kind: input, shape index: {}]
  %s2 = inlined_call_operand.vmem [shape: f32[2,8,32], index: 2, kind: input, shape index: {}]
  %s3 = inlined_call_operand.vmem [shape: f32[2,8,32], index: 3, kind: output, shape index: {0}]
  %s4 = inlined_call_operand.hbm [shape: f32[2,4,8,8], index: 4, kind: output, shape index: {1}]
  %5 = xla_tuple %s3, %s4
  %s6 = sld [smem:[#allocation0]]
  $region53: #{self_attention_forward.4} parent=0
    _
  %s8 = ssub.s32 1, %s6
  %s9 = scalar_select 0, %s8, %s6
  $region1: #{self_attention_forward.4} parent=0
    #allocation2 [shape = 'u8[32768]{0}', space=vmem, size = 0x8000, scoped, tag = 'output window, operand 1']
    #allocation3 [shape = 's32[2]{0}', space=sflag, size = 0x8, scoped, tag = 'scoped memory for self_attention_forward.4']
    %10 = vsyncpa [#allocation3], 0
    %s11 = scalar_lea.sflag [#allocation3], 1
    %12 = vsyncpa %s11, 0
    loop: start=0, step=1, limit=4
    $region2: #{self_attention_forward.4} parent=1 // loop_pre_header
      _
    $region3: #{self_attention_forward.4} parent=1 // loop_header
      %s14 = sphi 0, %s18
      %p15 = scmp.ge.s32.totalorder %s14, 4
      %s24 = sphi 0, %s26
      %s27 = sphi 0, %s24
      %s28 = sphi 0, %s27
      %s44 = sphi 0, %s28
      %s50 = sphi 0, %s52
      %s53 = sphi 0, %s50
      %s54 = sphi 0, %s53
      %s70 = sphi 0, %s54
      %s76 = sphi 0, %s78
      %s79 = sphi 0, %s76
      %s80 = sphi 0, %s79
      %s96 = sphi 0, %s80
      %s102 = sphi 0, %s104
      %s105 = sphi 0, %s102
      %s106 = sphi 0, %s105
      %s122 = sphi 0, %s106
      %s128 = sphi 0, %s130
      %s131 = sphi 0, %s128
      %s132 = sphi 0, %s131
      %s148 = sphi 0, %s132
    $region4: #{self_attention_forward.4} parent=1 // loop_header_branch
      %17 = sbr.rel (%p15) target = $region8
    $region5: #{self_attention_forward.4} parent=1 // loop_body
      %s19 = ssub.s32 %s14, 1
      %s20 = ssub.s32 %s14, 2
      %s21 = sadd.s32 %s14, 1
      %s22 = ssub.s32 %s14, %s21
      %p23 = scmp.eq.s32.totalorder %s22, 0
      %s25 = sadd.s32 %s24, 1
      %s26 = scalar_select %p23, %s24, %s25
      %p29 = pneg %p23
      %p30 = scmp.eq.s32.totalorder %s14, 1
      %p31 = por %p29, %p30
      %p32 = scmp.ne.s32.totalorder %s24, %s27
      %p33 = scmp.eq.s32.totalorder %s14, 0
      %p34 = por %p32, %p33
      %p35 = scmp.ne.s32.totalorder %s24, %s27
      %p36 = scmp.eq.s32.totalorder %s19, 1
      %p37 = por %p35, %p36
      %p38 = scmp.ne.s32.totalorder %s27, %s28
      %p39 = scmp.eq.s32.totalorder %s19, 0
      %p40 = por %p38, %p39
      %p41 = scmp.ne.s32.totalorder %s27, %s28
      %p42 = scmp.eq.s32.totalorder %s20, 1
      %p43 = por %p41, %p42
      %p45 = scmp.ne.s32.totalorder %s28, %s44
      %p46 = scmp.eq.s32.totalorder %s20, 0
      %p47 = por %p45, %p46
      %s48 = ssub.s32 %s14, %s21
      %p49 = scmp.eq.s32.totalorder %s48, 0
      %s51 = sadd.s32 %s50, 1
      %s52 = scalar_select %p49, %s50, %s51
      %p55 = pneg %p49
      %p56 = scmp.eq.s32.totalorder %s14, 1
      %p57 = por %p55, %p56
      %p58 = scmp.ne.s32.totalorder %s50, %s53
      %p59 = scmp.eq.s32.totalorder %s14, 0
      %p60 = por %p58, %p59
      %p61 = scmp.ne.s32.totalorder %s50, %s53
      %p62 = scmp.eq.s32.totalorder %s19, 1
      %p63 = por %p61, %p62
      %p64 = scmp.ne.s32.totalorder %s53, %s54
      %p65 = scmp.eq.s32.totalorder %s19, 0
      %p66 = por %p64, %p65
      %p67 = scmp.ne.s32.totalorder %s53, %s54
      %p68 = scmp.eq.s32.totalorder %s20, 1
      %p69 = por %p67, %p68
      %p71 = scmp.ne.s32.totalorder %s54, %s70
      %p72 = scmp.eq.s32.totalorder %s20, 0
      %p73 = por %p71, %p72
      %s74 = ssub.s32 %s14, %s21
      %p75 = scmp.eq.s32.totalorder %s74, 0
      %s77 = sadd.s32 %s76, 1
      %s78 = scalar_select %p75, %s76, %s77
      %p81 = pneg %p75
      %p82 = scmp.eq.s32.totalorder %s14, 1
      %p83 = por %p81, %p82
      %p84 = scmp.ne.s32.totalorder %s76, %s79
      %p85 = scmp.eq.s32.totalorder %s14, 0
      %p86 = por %p84, %p85
      %p87 = scmp.ne.s32.totalorder %s76, %s79
      %p88 = scmp.eq.s32.totalorder %s19, 1
      %p89 = por %p87, %p88
      %p90 = scmp.ne.s32.totalorder %s79, %s80
      %p91 = scmp.eq.s32.totalorder %s19, 0
      %p92 = por %p90, %p91
      %p93 = scmp.ne.s32.totalorder %s79, %s80
      %p94 = scmp.eq.s32.totalorder %s20, 1
      %p95 = por %p93, %p94
      %p97 = scmp.ne.s32.totalorder %s80, %s96
      %p98 = scmp.eq.s32.totalorder %s20, 0
      %p99 = por %p97, %p98
      %s100 = ssub.s32 %s14, %s21
      %p101 = scmp.eq.s32.totalorder %s100, 0
      %s103 = sadd.s32 %s102, 1
      %s104 = scalar_select %p101, %s102, %s103
      %p107 = pneg %p101
      %p108 = scmp.eq.s32.totalorder %s14, 1
      %p109 = por %p107, %p108
      %p110 = scmp.ne.s32.totalorder %s102, %s105
      %p111 = scmp.eq.s32.totalorder %s14, 0
      %p112 = por %p110, %p111
      %p113 = scmp.ne.s32.totalorder %s102, %s105
      %p114 = scmp.eq.s32.totalorder %s19, 1
      %p115 = por %p113, %p114
      %p116 = scmp.ne.s32.totalorder %s105, %s106
      %p117 = scmp.eq.s32.totalorder %s19, 0
      %p118 = por %p116, %p117
      %p119 = scmp.ne.s32.totalorder %s105, %s106
      %p120 = scmp.eq.s32.totalorder %s20, 1
      %p121 = por %p119, %p120
      %p123 = scmp.ne.s32.totalorder %s106, %s122
      %p124 = scmp.eq.s32.totalorder %s20, 0
      %p125 = por %p123, %p124
      %s126 = ssub.s32 %s14, %s21
      %p127 = scmp.eq.s32.totalorder %s126, 0
      %s129 = sadd.s32 %s128, 1
      %s130 = scalar_select %p127, %s128, %s129
      %p133 = pneg %p127
      %p134 = scmp.eq.s32.totalorder %s14, 1
      %p135 = por %p133, %p134
      %p136 = scmp.ne.s32.totalorder %s128, %s131
      %p137 = scmp.eq.s32.totalorder %s14, 0
      %p138 = por %p136, %p137
      %p139 = scmp.ne.s32.totalorder %s128, %s131
      %p140 = scmp.eq.s32.totalorder %s19, 1
      %p141 = por %p139, %p140
      %p142 = scmp.ne.s32.totalorder %s131, %s132
      %p143 = scmp.eq.s32.totalorder %s19, 0
      %p144 = por %p142, %p143
      %p145 = scmp.ne.s32.totalorder %s131, %s132
      %p146 = scmp.eq.s32.totalorder %s20, 1
      %p147 = por %p145, %p146
      %p149 = scmp.ne.s32.totalorder %s132, %s148
      %p150 = scmp.eq.s32.totalorder %s20, 0
      %p151 = por %p149, %p150
      %p152 = scmp.le.s32.totalorder 1, %s14
      %p153 = scmp.lt.s32.totalorder %s14, 3
      %p154 = pnand %p152, %p153
      %p155 = pneg %p154
      // Predicated region
      $region9: #{self_attention_forward.4} parent=5 // pred_check
        _
      $region10: #{self_attention_forward.4} parent=5 // pred_check_branch
        %157 = sbr.rel (%p154) target = $region12
      $region11: #{self_attention_forward.4} parent=5 // pred_region
        %s158 = ssub.s32 %s14, 1
      $region12: #{self_attention_forward.4} parent=5 // pred_fallthru
        _
      %p159 = scmp.lt.s32.totalorder %s14, 2
      // Predicated region
      $region13: #{self_attention_forward.4} parent=5 // pred_check
        %p160 = pneg %p159
      $region14: #{self_attention_forward.4} parent=5 // pred_check_branch
        %162 = sbr.rel (%p160) target = $region16
      $region15: #{self_attention_forward.4} parent=5 // pred_region
        // Predicated region
        $region17: #{self_attention_forward.4} parent=15 // pred_check
          %p163 = pneg %p34
        $region18: #{self_attention_forward.4} parent=15 // pred_check_branch
          %165 = sbr.rel (%p163) target = $region20
        $region19: #{self_attention_forward.4} parent=15 // pred_region
          %p166 = scmp.lt.s32.totalorder %s14, 1
          %s167 = scalar_select %p166, %s14, 1
          %s168 = smul.addr %s167, 8
          %s169 = scalar_lea.vmem %s0, %s168
        $region20: #{self_attention_forward.4} parent=15 // pred_fallthru
          _
        // Predicated region
        $region21: #{self_attention_forward.4} parent=15 // pred_check
          %p170 = pneg %p60
        $region22: #{self_attention_forward.4} parent=15 // pred_check_branch
          %172 = sbr.rel (%p170) target = $region24
        $region23: #{self_attention_forward.4} parent=15 // pred_region
          %p173 = scmp.lt.s32.totalorder %s14, 1
          %s174 = scalar_select %p173, %s14, 1
          %s175 = smul.addr %s174, 8
          %s176 = scalar_lea.vmem %s1, %s175
        $region24: #{self_attention_forward.4} parent=15 // pred_fallthru
          _
        // Predicated region
        $region25: #{self_attention_forward.4} parent=15 // pred_check
          %p177 = pneg %p86
        $region26: #{self_attention_forward.4} parent=15 // pred_check_branch
          %179 = sbr.rel (%p177) target = $region28
        $region27: #{self_attention_forward.4} parent=15 // pred_region
          %p180 = scmp.lt.s32.totalorder %s14, 1
          %s181 = scalar_select %p180, %s14, 1
          %s182 = smul.addr %s181, 8
          %s183 = scalar_lea.vmem %s2, %s182
        $region28: #{self_attention_forward.4} parent=15 // pred_fallthru
          _
      $region16: #{self_attention_forward.4} parent=5 // pred_fallthru
        _
      %p184 = scmp.le.s32.totalorder 1, %s14
      %p185 = scmp.lt.s32.totalorder %s14, 3
      %p186 = pnand %p184, %p185
      %p187 = pneg %p186
      // Predicated region
      $region29: #{self_attention_forward.4} parent=5 // pred_check
        _
      $region30: #{self_attention_forward.4} parent=5 // pred_check_branch
        %189 = sbr.rel (%p186) target = $region32
      $region31: #{self_attention_forward.4} parent=5 // pred_region
        %s190 = ssub.s32 %s14, 1
        %p191 = scmp.lt.s32.totalorder %s19, 1
        %s192 = scalar_select %p191, %s19, 1
        %s193 = smul.addr %s192, 8
        %s194 = scalar_lea.vmem %s0, %s193
        %p195 = pneg %p40
        %p196 = pneg %p37
        %p197 = scmp.lt.s32.totalorder %s19, 1
        %s198 = scalar_select %p197, %s19, 1
        %s199 = smul.addr %s198, 8
        %s200 = scalar_lea.vmem %s1, %s199
        %p201 = pneg %p66
        %p202 = pneg %p63
        %p203 = scmp.lt.s32.totalorder %s19, 1
        %s204 = scalar_select %p203, %s19, 1
        %s205 = smul.addr %s204, 8
        %s206 = scalar_lea.vmem %s2, %s205
        %p207 = pneg %p92
        %p208 = pneg %p89
        %p209 = pneg %p118
        %p210 = pneg %p115
        %p211 = scmp.lt.s32.totalorder %s19, 1
        %s212 = scalar_select %p211, %s19, 1
        %s213 = smul.addr %s212, 8
        %s214 = scalar_lea.vmem %s3, %s213
        %p215 = pneg %p144
        %p216 = pneg %p141
        %s217 = sand.u32 %s131, 1
        %s218 = scalar_lea.sflag [#allocation3], %s217
        %s219 = sand.u32 %s131, 1
        %s220 = smul.addr %s219, 32
        %s221 = scalar_lea.vmem [#allocation2], %s220
        %p222 = scmp.lt.s32.totalorder %s19, 1
        %s223 = scalar_select %p222, %s19, 1
        %s224 = smul.addr %s223, 8
        %s225 = scalar_lea.vmem %s0, %s224
        %p226 = scmp.lt.s32.totalorder %s19, 1
        %s227 = scalar_select %p226, %s19, 1
        %s228 = smul.addr %s227, 8
        %s229 = scalar_lea.vmem %s1, %s228
        %p230 = scmp.lt.s32.totalorder %s19, 1
        %s231 = scalar_select %p230, %s19, 1
        %s232 = smul.addr %s231, 8
        %s233 = scalar_lea.vmem %s2, %s232
        %p234 = scmp.lt.s32.totalorder %s19, 1
        %s235 = scalar_select %p234, %s19, 1
        %s236 = smul.addr %s235, 8
        %s237 = scalar_lea.vmem %s3, %s236
        %v238 = vld [vmem:[%s225] sm:$0xff]
        %v239 = vld [vmem:[%s229] sm:$0xff]
        %v240 = vld [vmem:[%s233] sm:$0xff]
        %v241 = vmul.f32 %v238, 0.35355338
        %vm242 = vcmask 64512
        %v244 = vsel %vm242, %v241, 0
        %v247 = vsel %vm242, %v239, 0
        %249 = vmatpush.xpose.msra.mxu0 0.0
        %250 = vmatpush.xpose.msra.mxu0 0.0
        %251 = vmatpush.xpose.msra.mxu0 0.0
        %252 = vmatpush.xpose.msra.mxu0 0.0
        %253 = vmatpush.xpose.msra.mxu0 0.0
        %254 = vmatpush.xpose.msra.mxu0 0.0
        %255 = vmatpush.xpose.msra.mxu0 0.0
        %256 = vmatpush.xpose.msra.mxu0 0.0
        %257 = vmatpush.xpose.msra.mxu0 0.0
        %258 = vmatpush.xpose.msra.mxu0 0.0
        %259 = vmatpush.xpose.msra.mxu0 0.0
        %260 = vmatpush.xpose.msra.mxu0 0.0
        %261 = vmatpush.xpose.msra.mxu0 0.0
        %262 = vmatpush.xpose.msra.mxu0 0.0
        %263 = vmatpush.xpose.msra.mxu0 0.0
        %264 = vmatpush.xpose.msra.mxu0 %v247
        %265 = vmatmul.f32.gmra.mxu0 %v244
        %v266 = vpop.f32.mrf.mxu0
        %v267 = vadd.f32 0.0, %v266
        %268 = vdwg.mxu0
        %v269 = vsel %vm242, %v267, -inf
        %270 = vmax.xlane.f32.xlu0 %v269
        %v271 = vpop.xlane.xlu0 %270
        %v272 = vsub.f32 %v267, %v271
        %v273 = vmul.f32 %v272, 1.442695
        %v274 = vpow.pop %v273
        %v275 = vsel %vm242, %v274, 0.0
        %276 = vadd.xlane.f32.xlu0 %v275
        %v277 = vpop.xlane.xlu0 %276
        %v278 = vrcp.pop %v277
        %v279 = vmul.f32 %v274, %v278
        %v281 = vsel %vm242, %v279, 0
        %283 = vmatpush.msra.mxu0 0.0
        %284 = vmatpush.msra.mxu0 0.0
        %285 = vmatpush.msra.mxu0 0.0
        %286 = vmatpush.msra.mxu0 0.0
        %287 = vmatpush.msra.mxu0 0.0
        %288 = vmatpush.msra.mxu0 0.0
        %289 = vmatpush.msra.mxu0 0.0
        %290 = vmatpush.msra.mxu0 0.0
        %291 = vmatpush.msra.mxu0 0.0
        %292 = vmatpush.msra.mxu0 0.0
        %293 = vmatpush.msra.mxu0 0.0
        %294 = vmatpush.msra.mxu0 0.0
        %295 = vmatpush.msra.mxu0 0.0
        %296 = vmatpush.msra.mxu0 0.0
        %297 = vmatpush.msra.mxu0 0.0
        %298 = vmatpush.msra.mxu0 %v240
        %299 = vmatmul.f32.gmra.mxu0 %v281
        %v300 = vpop.f32.mrf.mxu0
        %v301 = vadd.f32 0.0, %v300
        %302 = vdwg.mxu0
        %303 = vst.msk [vmem:[%s221] sm:$0xff] %vm242, %v279
        %304 = vrot.lane.b32.xlu0 %v241, 120
        %v305 = vpop.permute.xlu0 %304
        %306 = vrot.lane.b32.xlu0 %v239, 120
        %v307 = vpop.permute.xlu0 %306
        %v308 = vsel %vm242, %v305, 0
        %v310 = vsel %vm242, %v307, 0
        %312 = vmatpush.xpose.msra.mxu0 0.0
        %313 = vmatpush.xpose.msra.mxu0 0.0
        %314 = vmatpush.xpose.msra.mxu0 0.0
        %315 = vmatpush.xpose.msra.mxu0 0.0
        %316 = vmatpush.xpose.msra.mxu0 0.0
        %317 = vmatpush.xpose.msra.mxu0 0.0
        %318 = vmatpush.xpose.msra.mxu0 0.0
        %319 = vmatpush.xpose.msra.mxu0 0.0
        %320 = vmatpush.xpose.msra.mxu0 0.0
        %321 = vmatpush.xpose.msra.mxu0 0.0
        %322 = vmatpush.xpose.msra.mxu0 0.0
        %323 = vmatpush.xpose.msra.mxu0 0.0
        %324 = vmatpush.xpose.msra.mxu0 0.0
        %325 = vmatpush.xpose.msra.mxu0 0.0
        %326 = vmatpush.xpose.msra.mxu0 0.0
        %327 = vmatpush.xpose.msra.mxu0 %v310
        %328 = vmatmul.f32.gmra.mxu0 %v308
        %v329 = vpop.f32.mrf.mxu0
        %v330 = vadd.f32 0.0, %v329
        %331 = vdwg.mxu0
        %v332 = vsel %vm242, %v330, -inf
        %333 = vmax.xlane.f32.xlu0 %v332
        %v334 = vpop.xlane.xlu0 %333
        %v335 = vsub.f32 %v330, %v334
        %v336 = vmul.f32 %v335, 1.442695
        %v337 = vpow.pop %v336
        %v338 = vsel %vm242, %v337, 0.0
        %339 = vadd.xlane.f32.xlu0 %v338
        %v340 = vpop.xlane.xlu0 %339
        %v341 = vrcp.pop %v340
        %v342 = vmul.f32 %v337, %v341
        %344 = vrot.lane.b32.xlu0 %v240, 120
        %v345 = vpop.permute.xlu0 %344
        %v348 = vsel %vm242, %v342, 0
        %350 = vmatpush.msra.mxu0 0.0
        %351 = vmatpush.msra.mxu0 0.0
        %352 = vmatpush.msra.mxu0 0.0
        %353 = vmatpush.msra.mxu0 0.0
        %354 = vmatpush.msra.mxu0 0.0
        %355 = vmatpush.msra.mxu0 0.0
        %356 = vmatpush.msra.mxu0 0.0
        %357 = vmatpush.msra.mxu0 0.0
        %358 = vmatpush.msra.mxu0 0.0
        %359 = vmatpush.msra.mxu0 0.0
        %360 = vmatpush.msra.mxu0 0.0
        %361 = vmatpush.msra.mxu0 0.0
        %362 = vmatpush.msra.mxu0 0.0
        %363 = vmatpush.msra.mxu0 0.0
        %364 = vmatpush.msra.mxu0 0.0
        %365 = vmatpush.msra.mxu0 %v345
        %366 = vmatmul.f32.gmra.mxu0 %v348
        %v367 = vpop.f32.mrf.mxu0
        %v368 = vadd.f32 0.0, %v367
        %369 = vdwg.mxu0
        %s370 = scalar_lea.vmem %s221, 8 [#allocation2]
        %371 = vst.msk [vmem:[%s370] sm:$0xff] %vm242, %v342
        %372 = vrot.lane.b32.xlu0 %v241, 112
        %v373 = vpop.permute.xlu0 %372
        %374 = vrot.lane.b32.xlu0 %v239, 112
        %v375 = vpop.permute.xlu0 %374
        %v376 = vsel %vm242, %v373, 0
        %v378 = vsel %vm242, %v375, 0
        %380 = vmatpush.xpose.msra.mxu0 0.0
        %381 = vmatpush.xpose.msra.mxu0 0.0
        %382 = vmatpush.xpose.msra.mxu0 0.0
        %383 = vmatpush.xpose.msra.mxu0 0.0
        %384 = vmatpush.xpose.msra.mxu0 0.0
        %385 = vmatpush.xpose.msra.mxu0 0.0
        %386 = vmatpush.xpose.msra.mxu0 0.0
        %387 = vmatpush.xpose.msra.mxu0 0.0
        %388 = vmatpush.xpose.msra.mxu0 0.0
        %389 = vmatpush.xpose.msra.mxu0 0.0
        %390 = vmatpush.xpose.msra.mxu0 0.0
        %391 = vmatpush.xpose.msra.mxu0 0.0
        %392 = vmatpush.xpose.msra.mxu0 0.0
        %393 = vmatpush.xpose.msra.mxu0 0.0
        %394 = vmatpush.xpose.msra.mxu0 0.0
        %395 = vmatpush.xpose.msra.mxu0 %v378
        %396 = vmatmul.f32.gmra.mxu0 %v376
        %v397 = vpop.f32.mrf.mxu0
        %v398 = vadd.f32 0.0, %v397
        %399 = vdwg.mxu0
        %v400 = vsel %vm242, %v398, -inf
        %401 = vmax.xlane.f32.xlu0 %v400
        %v402 = vpop.xlane.xlu0 %401
        %v403 = vsub.f32 %v398, %v402
        %v404 = vmul.f32 %v403, 1.442695
        %v405 = vpow.pop %v404
        %v406 = vsel %vm242, %v405, 0.0
        %407 = vadd.xlane.f32.xlu0 %v406
        %v408 = vpop.xlane.xlu0 %407
        %v409 = vrcp.pop %v408
        %v410 = vmul.f32 %v405, %v409
        %411 = vrot.lane.b32.xlu0 %v240, 112
        %v412 = vpop.permute.xlu0 %411
        %v415 = vsel %vm242, %v410, 0
        %417 = vmatpush.msra.mxu0 0.0
        %418 = vmatpush.msra.mxu0 0.0
        %419 = vmatpush.msra.mxu0 0.0
        %420 = vmatpush.msra.mxu0 0.0
        %421 = vmatpush.msra.mxu0 0.0
        %422 = vmatpush.msra.mxu0 0.0
        %423 = vmatpush.msra.mxu0 0.0
        %424 = vmatpush.msra.mxu0 0.0
        %425 = vmatpush.msra.mxu0 0.0
        %426 = vmatpush.msra.mxu0 0.0
        %427 = vmatpush.msra.mxu0 0.0
        %428 = vmatpush.msra.mxu0 0.0
        %429 = vmatpush.msra.mxu0 0.0
        %430 = vmatpush.msra.mxu0 0.0
        %431 = vmatpush.msra.mxu0 0.0
        %432 = vmatpush.msra.mxu0 %v412
        %433 = vmatmul.f32.gmra.mxu0 %v415
        %v434 = vpop.f32.mrf.mxu0
        %v435 = vadd.f32 0.0, %v434
        %436 = vdwg.mxu0
        %s437 = scalar_lea.vmem %s221, 16 [#allocation2]
        %438 = vst.msk [vmem:[%s437] sm:$0xff] %vm242, %v410
        %439 = vrot.lane.b32.xlu0 %v241, 104
        %v440 = vpop.permute.xlu0 %439
        %441 = vrot.lane.b32.xlu0 %v239, 104
        %v442 = vpop.permute.xlu0 %441
        %v443 = vsel %vm242, %v440, 0
        %v445 = vsel %vm242, %v442, 0
        %447 = vmatpush.xpose.msra.mxu0 0.0
        %448 = vmatpush.xpose.msra.mxu0 0.0
        %449 = vmatpush.xpose.msra.mxu0 0.0
        %450 = vmatpush.xpose.msra.mxu0 0.0
        %451 = vmatpush.xpose.msra.mxu0 0.0
        %452 = vmatpush.xpose.msra.mxu0 0.0
        %453 = vmatpush.xpose.msra.mxu0 0.0
        %454 = vmatpush.xpose.msra.mxu0 0.0
        %455 = vmatpush.xpose.msra.mxu0 0.0
        %456 = vmatpush.xpose.msra.mxu0 0.0
        %457 = vmatpush.xpose.msra.mxu0 0.0
        %458 = vmatpush.xpose.msra.mxu0 0.0
        %459 = vmatpush.xpose.msra.mxu0 0.0
        %460 = vmatpush.xpose.msra.mxu0 0.0
        %461 = vmatpush.xpose.msra.mxu0 0.0
        %462 = vmatpush.xpose.msra.mxu0 %v445
        %463 = vmatmul.f32.gmra.mxu0 %v443
        %v464 = vpop.f32.mrf.mxu0
        %v465 = vadd.f32 0.0, %v464
        %466 = vdwg.mxu0
        %v467 = vsel %vm242, %v465, -inf
        %468 = vmax.xlane.f32.xlu0 %v467
        %v469 = vpop.xlane.xlu0 %468
        %v470 = vsub.f32 %v465, %v469
        %v471 = vmul.f32 %v470, 1.442695
        %v472 = vpow.pop %v471
        %v473 = vsel %vm242, %v472, 0.0
        %474 = vadd.xlane.f32.xlu0 %v473
        %v475 = vpop.xlane.xlu0 %474
        %v476 = vrcp.pop %v475
        %v477 = vmul.f32 %v472, %v476
        %478 = vrot.lane.b32.xlu0 %v240, 104
        %v479 = vpop.permute.xlu0 %478
        %v482 = vsel %vm242, %v477, 0
        %484 = vmatpush.msra.mxu0 0.0
        %485 = vmatpush.msra.mxu0 0.0
        %486 = vmatpush.msra.mxu0 0.0
        %487 = vmatpush.msra.mxu0 0.0
        %488 = vmatpush.msra.mxu0 0.0
        %489 = vmatpush.msra.mxu0 0.0
        %490 = vmatpush.msra.mxu0 0.0
        %491 = vmatpush.msra.mxu0 0.0
        %492 = vmatpush.msra.mxu0 0.0
        %493 = vmatpush.msra.mxu0 0.0
        %494 = vmatpush.msra.mxu0 0.0
        %495 = vmatpush.msra.mxu0 0.0
        %496 = vmatpush.msra.mxu0 0.0
        %497 = vmatpush.msra.mxu0 0.0
        %498 = vmatpush.msra.mxu0 0.0
        %499 = vmatpush.msra.mxu0 %v479
        %500 = vmatmul.f32.gmra.mxu0 %v482
        %v501 = vpop.f32.mrf.mxu0
        %v502 = vadd.f32 0.0, %v501
        %503 = vdwg.mxu0
        %s504 = scalar_lea.vmem %s221, 24 [#allocation2]
        %505 = vst.msk [vmem:[%s504] sm:$0xff] %vm242, %v477
        %507 = vrot.lane.b32.xlu0 %v368, 8
        %v508 = vpop.permute.xlu0 %507
        %511 = vrot.lane.b32.xlu0 %v435, 16
        %v512 = vpop.permute.xlu0 %511
        %515 = vrot.lane.b32.xlu0 %v502, 24
        %v516 = vpop.permute.xlu0 %515
        %v518 = vsel %vm242, %v301, %v508
        %vm519 = vcmask 130048
        %v520 = vsel %vm519, %v518, %v512
        %vm521 = vcmask 195584
        %v522 = vsel %vm521, %v520, %v516
        %vm523 = vcmask 261120
        %524 = vst.msk [vmem:[%s237] sm:$0xff] %vm523, %v522
        %p525 = scmp.lt.s32.totalorder %s19, 1
        %s526 = scalar_select %p525, %s19, 1
        %s527 = smul.addr %s526, 8
        %s528 = scalar_lea.vmem %s3, %s527
        %s529 = sand.u32 %s131, 1
        %s530 = scalar_lea.sflag [#allocation3], %s529
        %s531 = sand.u32 %s131, 1
        %s532 = smul.addr %s531, 32
        %s533 = scalar_lea.vmem [#allocation2], %s532
        // Predicated region
        $region33: #{self_attention_forward.4} parent=31 // pred_check
          %p534 = pneg %p115
        $region34: #{self_attention_forward.4} parent=31 // pred_check_branch
          %536 = sbr.rel (%p534) target = $region36
        $region35: #{self_attention_forward.4} parent=31 // pred_region
          _
        $region36: #{self_attention_forward.4} parent=31 // pred_fallthru
          _
        // Predicated region
        $region37: #{self_attention_forward.4} parent=31 // pred_check
          %p537 = pneg %p141
        $region38: #{self_attention_forward.4} parent=31 // pred_check_branch
          %539 = sbr.rel (%p537) target = $region40
        $region39: #{self_attention_forward.4} parent=31 // pred_region
          %541 = vsyncadd %s530, 0
          %s542 = smul.addr %s19, 4
          %s543 = smul.addr %s542, 8
          %s544 = scalar_lea.hbm %s4, %s543
          %s545 = sshll.u32 %s533, 4
          %s546 = int_to_ptr.vmem [resolvable:$true] %s545
          %s547 = sshll.u32 %s544, 4
          %s548 = int_to_ptr.hbm [resolvable:$true] %s547
          %553 = dma.vmem_to_hbm [thread:$0]  %s546, 512, %s548, %s530, 128, 128, 8
        $region40: #{self_attention_forward.4} parent=31 // pred_fallthru
          _
      $region32: #{self_attention_forward.4} parent=5 // pred_fallthru
        _
      %p554 = scmp.le.s32.totalorder 2, %s14
      // Predicated region
      $region41: #{self_attention_forward.4} parent=5 // pred_check
        %p555 = pneg %p554
      $region42: #{self_attention_forward.4} parent=5 // pred_check_branch
        %557 = sbr.rel (%p555) target = $region44
      $region43: #{self_attention_forward.4} parent=5 // pred_region
        %s558 = ssub.s32 %s14, 2
        // Predicated region
        $region45: #{self_attention_forward.4} parent=43 // pred_check
          %p559 = pneg %p121
        $region46: #{self_attention_forward.4} parent=43 // pred_check_branch
          %561 = sbr.rel (%p559) target = $region48
        $region47: #{self_attention_forward.4} parent=43 // pred_region
          %p562 = scmp.lt.s32.totalorder %s20, 1
          %s563 = scalar_select %p562, %s20, 1
          %s564 = smul.addr %s563, 8
          %s565 = scalar_lea.vmem %s3, %s564
        $region48: #{self_attention_forward.4} parent=43 // pred_fallthru
          _
        // Predicated region
        $region49: #{self_attention_forward.4} parent=43 // pred_check
          %p566 = pneg %p147
        $region50: #{self_attention_forward.4} parent=43 // pred_check_branch
          %568 = sbr.rel (%p566) target = $region52
        $region51: #{self_attention_forward.4} parent=43 // pred_region
          %s569 = sand.u32 %s132, 1
          %s570 = scalar_lea.sflag [#allocation3], %s569
          %s571 = sand.u32 %s132, 1
          %s572 = smul.addr %s571, 32
          %s573 = scalar_lea.vmem [#allocation2], %s572
          %575 = dma.done %s570, 512
        $region52: #{self_attention_forward.4} parent=43 // pred_fallthru
          _
      $region44: #{self_attention_forward.4} parent=5 // pred_fallthru
        _
    $region6: #{self_attention_forward.4} parent=1 // loop_footer
      %s18 = sadd.s32 1, %s14
    $region7: #{self_attention_forward.4} parent=1 // loop_footer_branch
      %13 = sbr.rel target = $region3
    $region8: #{self_attention_forward.4} parent=1 // loop_exit
      _
    %576 = vsyncpa [#allocation3], 1
    %s577 = scalar_lea.sflag [#allocation3], 1
    %578 = vsyncpa %s577, 1

// kernel: self_attention_forward.5
$region0: #{self_attention_forward.5}
  #allocation0 [shape = 'u32[]', space=smem, size = 0x4, offset = 0x4, fixed_abs, tag = 'smem constant byte address 0x4 - core index']
  #allocation1 [shape = 'u32[72,128]{1,0:T(1,128)}', space=vmem, size = 0x9000, scoped, tag = 'internal scratch']
  #allocation2 [shape = 'f32[16,32]{1,0:T(8,128)}', space=vmem, size = 0x2000, scoped, tag = 'scratch operand']
  %s0 = inlined_call_operand.vmem [shape: f32[16,32], index: 0, kind: input, shape index: {}]
  %s1 = inlined_call_operand.hbm [shape: f32[32,32], index: 1, kind: input, shape index: {}]
  %s2 = inlined_call_operand.vmem [shape: f32[1,32], index: 2, kind: input, shape index: {}]
  %s3 = inlined_call_operand.hbm [shape: f32[16,32], index: 3, kind: output, shape index: {}]
  %s4 = sld [smem:[#allocation0]]
  $region34: #{self_attention_forward.5} parent=0
    _
  %s6 = ssub.s32 1, %s4
  %s7 = scalar_select 0, %s6, %s4
  $region1: #{self_attention_forward.5} parent=0
    #allocation3 [shape = 'u8[16384]{0}', space=vmem, size = 0x4000, scoped, tag = 'input window, operand 1, single buffered']
    #allocation4 [shape = 's32[1]{0}', space=sflag, size = 0x4, scoped, tag = 'scoped memory for self_attention_forward.5']
    #allocation5 [shape = 's32[1]{0}', space=sflag, size = 0x4, scoped, tag = 'scoped memory for self_attention_forward.5']
    #allocation6 [shape = 'u8[8192]{0}', space=vmem, size = 0x2000, scoped, tag = 'output window, operand 0, single buffered']
    %8 = vsyncpa [#allocation4], 0
    %9 = vsyncpa [#allocation5], 0
    // Predicated region
    $region2: #{self_attention_forward.5} parent=1 // pred_check
      _
    $region3: #{self_attention_forward.5} parent=1 // pred_check_branch
      %11 = sbr.rel (0) target = $region5
    $region4: #{self_attention_forward.5} parent=1 // pred_region
      _
    $region5: #{self_attention_forward.5} parent=1 // pred_fallthru
      _
    // Predicated region
    $region6: #{self_attention_forward.5} parent=1 // pred_check
      _
    $region7: #{self_attention_forward.5} parent=1 // pred_check_branch
      %13 = sbr.rel (0) target = $region9
    $region8: #{self_attention_forward.5} parent=1 // pred_region
      %15 = vsyncadd [#allocation4], 0
      %s16 = sshll.u32 %s1, 4
      %s17 = int_to_ptr.hbm [resolvable:$true] %s16
      %s18 = sshll.u32 [#allocation3], 4
      %s19 = int_to_ptr.vmem [resolvable:$true] %s18
      %24 = dma.hbm_to_vmem [thread:$0]  %s17, 512, %s19, [#allocation4], 128, 128, 8
    $region9: #{self_attention_forward.5} parent=1 // pred_fallthru
      _
    // Predicated region
    $region10: #{self_attention_forward.5} parent=1 // pred_check
      _
    $region11: #{self_attention_forward.5} parent=1 // pred_check_branch
      %26 = sbr.rel (0) target = $region13
    $region12: #{self_attention_forward.5} parent=1 // pred_region
      _
    $region13: #{self_attention_forward.5} parent=1 // pred_fallthru
      _
    // Predicated region
    $region14: #{self_attention_forward.5} parent=1 // pred_check
      _
    $region15: #{self_attention_forward.5} parent=1 // pred_check_branch
      %28 = sbr.rel (0) target = $region17
    $region16: #{self_attention_forward.5} parent=1 // pred_region
      %30 = dma.done [#allocation4], 512
    $region17: #{self_attention_forward.5} parent=1 // pred_fallthru
      _
    %p31 = scmp.eq.s32.totalorder 0, 0
    // Predicated region
    $region18: #{self_attention_forward.5} parent=1 // pred_check
      %p32 = pneg %p31
    $region19: #{self_attention_forward.5} parent=1 // pred_check_branch
      %34 = sbr.rel (%p32) target = $region21
    $region20: #{self_attention_forward.5} parent=1 // pred_region
      %vm35 = vcmask 261120
      %36 = vst.msk [vmem:[#allocation2] sm:$0xff] %vm35, 0.0
      %37 = vst.msk [vmem:[#allocation2 + $0x8] sm:$0xff] %vm35, 0.0
    $region21: #{self_attention_forward.5} parent=1 // pred_fallthru
      _
    %v38 = vld [vmem:[#allocation2] sm:$0xff]
    %v39 = vld [vmem:[#allocation2 + $0x8] sm:$0xff]
    %v40 = vld [vmem:[%s0] sm:$0xff]
    %v41 = vld [vmem:[%s0 + $0x8] sm:$0xff]
    %v42 = vld [vmem:[#allocation3] sm:$0xff]
    %v43 = vld [vmem:[#allocation3 + $0x8] sm:$0xff]
    %v44 = vld [vmem:[#allocation3 + $0x10] sm:$0xff]
    %v45 = vld [vmem:[#allocation3 + $0x18] sm:$0xff]
    %vm46 = vcmask 261120
    %v48 = vsel %vm46, %v40, 0
    %v51 = vsel %vm46, %v41, 0
    %53 = vmatpush.msra.mxu0 0.0
    %54 = vmatpush.msra.mxu0 0.0
    %55 = vmatpush.msra.mxu0 0.0
    %56 = vmatpush.msra.mxu0 0.0
    %57 = vmatpush.msra.mxu0 0.0
    %58 = vmatpush.msra.mxu0 0.0
    %59 = vmatpush.msra.mxu0 0.0
    %60 = vmatpush.msra.mxu0 0.0
    %61 = vmatpush.msra.mxu0 0.0
    %62 = vmatpush.msra.mxu0 0.0
    %63 = vmatpush.msra.mxu0 0.0
    %64 = vmatpush.msra.mxu0 0.0
    %65 = vmatpush.msra.mxu0 %v45
    %66 = vmatpush.msra.mxu0 %v44
    %67 = vmatpush.msra.mxu0 %v43
    %68 = vmatpush.msra.mxu0 %v42
    %69 = vmatmul.f32.gmra.mxu0 %v48
    %v70 = vpop.f32.mrf.mxu0
    %v71 = vadd.f32 0.0, %v70
    %72 = vmatmul.f32.gmra.mxu0 %v51
    %v73 = vpop.f32.mrf.mxu0
    %v74 = vadd.f32 0.0, %v73
    %75 = vdwg.mxu0
    %v76 = vadd.f32 %v38, %v71
    %v77 = vadd.f32 %v39, %v74
    %78 = vst.msk [vmem:[#allocation2] sm:$0xff] %vm46, %v76
    %79 = vst.msk [vmem:[#allocation2 + $0x8] sm:$0xff] %vm46, %v77
    // Predicated region
    $region22: #{self_attention_forward.5} parent=1 // pred_check
      %p80 = pneg %p31
    $region23: #{self_attention_forward.5} parent=1 // pred_check_branch
      %82 = sbr.rel (%p80) target = $region25
    $region24: #{self_attention_forward.5} parent=1 // pred_region
      %v83 = vld [vmem:[#allocation2] sm:$0xff]
      %v84 = vld [vmem:[#allocation2 + $0x8] sm:$0xff]
      %v85 = vld [vmem:[%s2] sm:$0x1]
      %v87 = vperm.slane %v85, 0
      %v89 = vadd.f32 %v83, %v87
      %v90 = vadd.f32 %v84, %v87
      %91 = vst.msk [vmem:[#allocation6] sm:$0xff] %vm46, %v89
      %92 = vst.msk [vmem:[#allocation6 + $0x8] sm:$0xff] %vm46, %v90
    $region25: #{self_attention_forward.5} parent=1 // pred_fallthru
      _
    // Predicated region
    $region26: #{self_attention_forward.5} parent=1 // pred_check
      _
    $region27: #{self_attention_forward.5} parent=1 // pred_check_branch
      %94 = sbr.rel (0) target = $region29
    $region28: #{self_attention_forward.5} parent=1 // pred_region
      %96 = vsyncadd [#allocation5], 0
      %s97 = sshll.u32 [#allocation6], 4
      %s98 = int_to_ptr.vmem [resolvable:$true] %s97
      %s99 = sshll.u32 %s3, 4
      %s100 = int_to_ptr.hbm [resolvable:$true] %s99
      %105 = dma.vmem_to_hbm [thread:$0]  %s98, 256, %s100, [#allocation5], 128, 128, 8
    $region29: #{self_attention_forward.5} parent=1 // pred_fallthru
      _
    // Predicated region
    $region30: #{self_attention_forward.5} parent=1 // pred_check
      _
    $region31: #{self_attention_forward.5} parent=1 // pred_check_branch
      %107 = sbr.rel (0) target = $region33
    $region32: #{self_attention_forward.5} parent=1 // pred_region
      %109 = dma.done [#allocation5], 256
    $region33: #{self_attention_forward.5} parent=1 // pred_fallthru
      _
    %110 = vsyncpa [#allocation4], 1
    %111 = vsyncpa [#allocation5], 1

</llo_original>
